<compile_context>
chip_gen: v7x
topology: tpu7x:2x2x1
jax: 0.10.0
libtpu: 0.0.40
codegen_flags: <defaults>
</compile_context>

<pallas_src>
import jax
import jax.numpy as jnp
from jax.experimental import pallas as pl
from jax.experimental.pallas import tpu as pltpu


def _lstm_kernel(x_ref, wih0_ref, b0_ref, whh0_ref, wih1_ref, whh1_ref,
                 b1_ref, wfc_ref, bfc_ref, out_ref):
    B, T, I = x_ref.shape
    H = whh0_ref.shape[0]            # whh0: (H, 4H)
    G = 4 * H

    # ---- Hoisted layer-0 input projection (bias folded), made time-major ---
    x = x_ref[...]                   # (B, T, I) f32
    wih0 = wih0_ref[...]             # (I, 4H)   f32
    b0 = b0_ref[...]                 # (1, 4H)   f32
    if I == 1:
        # (B,T,1) * (1,1,4H): pure VPU broadcast-mul, avoids a K=1 MXU op.
        x_proj = x * wih0.reshape(1, 1, G) + b0.reshape(1, 1, G)
    else:
        x_proj = (jnp.dot(x.reshape(B * T, I), wih0,
                          preferred_element_type=jnp.float32)
                  + b0).reshape(B, T, G)
    x_proj = jnp.transpose(x_proj, (1, 0, 2))        # (T, B, 4H), one-time

    whh0 = whh0_ref[...]             # (H, 4H)  bf16 (fast) or f32 (exact)
    wih1 = wih1_ref[...]             # (H, 4H)
    whh1 = whh1_ref[...]             # (H, 4H)
    mm_dtype = whh0.dtype

    # Hoisted broadcasts (JAX does not CSE broadcast_in_dim).
    b1b = jnp.broadcast_to(b1_ref[...], (B, G))

    # Gate order [i, f, o, g]: first 3H lanes are sigmoid gates, last H tanh.
    # sigmoid(x) = 0.5 * tanh(0.5 x) + 0.5  -> single tanh push per cell.
    lane = jax.lax.broadcasted_iota(jnp.int32, (B, G), 1)
    is_sig = lane < 3 * H
    scale_b = jnp.where(is_sig, jnp.float32(0.5), jnp.float32(1.0))
    offs_b = jnp.where(is_sig, jnp.float32(0.5), jnp.float32(0.0))

    def gate_act(gates):
        t = jnp.tanh(gates * scale_b)        # one 4H-wide EUP push
        a = t * scale_b + offs_b             # affine fixup rides on the VPU
        return a[:, :H], a[:, H:2 * H], a[:, 2 * H:3 * H], a[:, 3 * H:]

    z = jnp.zeros((B, H), jnp.float32)
    h0, c0, h1, c1 = z, z, z, z

    # T is static -> fully unrolled; both "loops" below land in one basic
    # block, so the LLO scheduler interleaves layer-1(t) with layer-0(t+1).
    g1_inp = [None] * T

    # ---- layer 0 recurrence; layer-1 input projection computed off-chain ---
    for t in range(T):
        g0 = x_proj[t] + jnp.dot(h0.astype(mm_dtype), whh0,
                                 preferred_element_type=jnp.float32)
        i0, f0, o0, gg0 = gate_act(g0)
        c0 = f0 * c0 + i0 * gg0
        h0 = o0 * jnp.tanh(c0)
        # depends only on the fresh h0_t, never on h1 -> off the h1 chain
        g1_inp[t] = (jnp.dot(h0.astype(mm_dtype), wih1,
                             preferred_element_type=jnp.float32) + b1b)

    # ---- layer 1 recurrence: chain = whh1 dot + one activation slab/step ---
    for t in range(T):
        g1 = g1_inp[t] + jnp.dot(h1.astype(mm_dtype), whh1,
                                 preferred_element_type=jnp.float32)
        i1, f1, o1, gg1 = gate_act(g1)
        c1 = f1 * c1 + i1 * gg1
        h1 = o1 * jnp.tanh(c1)

    # Final Linear(H, 1) on the VPU/XLU: broadcast-mul + lane reduction.
    out_ref[...] = (jnp.sum(h1 * wfc_ref[...], axis=-1, keepdims=True)
                    + bfc_ref[...])


def prepare_params(params, matmul_dtype=jnp.bfloat16):
    """Repack PyTorch-layout params into the kernel's fast layout.

    - gate columns permuted [i, f, g, o] -> [i, f, o, g],
    - fc weight stored as a (1, H) row for the VPU dot,
    - matmul-only operands cast to `matmul_dtype` (bf16 default = MXU-native
      fast path on v5e/v6e/v7x; f32 = exact validation path); everything
      elementwise stays f32.
    """
    wih0, whh0, b0, wih1, whh1, b1, wfc, bfc = params
    H = whh0.shape[0]

    def perm(w):  # [i,f,g,o] -> [i,f,o,g] along the gate axis
        return jnp.concatenate(
            [w[..., :2 * H], w[..., 3 * H:], w[..., 2 * H:3 * H]], axis=-1)

    return (perm(wih0).astype(jnp.float32),
            perm(b0).astype(jnp.float32),
            perm(whh0).astype(matmul_dtype),
            perm(wih1).astype(matmul_dtype),
            perm(whh1).astype(matmul_dtype),
            perm(b1).astype(jnp.float32),
            wfc.reshape(1, H).astype(jnp.float32),
            bfc.astype(jnp.float32))


def lstm_model_forward(x, kparams):
    """x: (B, T, I) float32, batch_first (PyTorch layout). Returns (B, 1) f32."""
    wih0, b0, whh0, wih1, whh1, b1, wfc_row, bfc = kparams
    B = x.shape[0]
    vmem = pl.BlockSpec(memory_space=pltpu.MemorySpace.VMEM)
    # Single grid-less invocation: total operand footprint < 1 MiB, far under
    # VMEM on every generation.  For large B (>=16) one would add
    # grid=(B//tb,) with dimension_semantics=("parallel",) for megacore.
    return pl.pallas_call(
        _lstm_kernel,
        out_shape=jax.ShapeDtypeStruct((B, 1), jnp.float32),
        in_specs=[vmem] * 9,
        out_specs=vmem,
    )(x, wih0, b0, whh0, wih1, whh1, b1, wfc_row, bfc)


def init_params(key, input_size=1, hidden_size=64):
    """PyTorch-layout params, U(-1/sqrt(H), 1/sqrt(H)), gate order [i,f,g,o]."""
    H = hidden_size
    bound = 1.0 / jnp.sqrt(jnp.float32(H))
    ks = jax.random.split(key, 10)

    def u(k, shape):
        return jax.random.uniform(k, shape, jnp.float32, -bound, bound)

    wih0 = u(ks[0], (input_size, 4 * H))
    whh0 = u(ks[1], (H, 4 * H))
    b0 = u(ks[2], (1, 4 * H)) + u(ks[3], (1, 4 * H))     # b_ih + b_hh folded
    wih1 = u(ks[4], (H, 4 * H))
    whh1 = u(ks[5], (H, 4 * H))
    b1 = u(ks[6], (1, 4 * H)) + u(ks[7], (1, 4 * H))
    wfc = u(ks[8], (H, 1))
    bfc = u(ks[9], (1, 1))
    return (wih0, whh0, b0, wih1, whh1, b1, wfc, bfc)


def reference_forward(x, params):
    """Pure-JAX f32 reference with PyTorch LSTM semantics (for validation)."""
    wih0, whh0, b0, wih1, whh1, b1, wfc, bfc = params
    B, T, _ = x.shape
    H = whh0.shape[0]

    def cell(x_t, h, c, wih, whh, b):
        g = x_t @ wih + h @ whh + b
        i_g = jax.nn.sigmoid(g[:, 0 * H:1 * H])
        f_g = jax.nn.sigmoid(g[:, 1 * H:2 * H])
        g_g = jnp.tanh(g[:, 2 * H:3 * H])
        o_g = jax.nn.sigmoid(g[:, 3 * H:4 * H])
        c = f_g * c + i_g * g_g
        h = o_g * jnp.tanh(c)
        return h, c

    h0 = c0 = h1 = c1 = jnp.zeros((B, H), jnp.float32)
    for t in range(T):
        h0, c0 = cell(x[:, t, :], h0, c0, wih0, whh0, b0)
        h1, c1 = cell(h0, h1, c1, wih1, whh1, b1)
    return h1 @ wfc + bfc


if __name__ == "__main__":
    key = jax.random.PRNGKey(0)
    k_x, k_p = jax.random.split(key)

    B, T, I, H = 2, 8, 1, 64
    x = jax.random.normal(k_x, (B, T, I), jnp.float32)
    params = init_params(k_p, input_size=I, hidden_size=H)
    ref = reference_forward(x, params)

    # Exact path (f32 MXU operands): must match the f32 reference tightly.
    out_f32 = jax.block_until_ready(
        lstm_model_forward(x, prepare_params(params, jnp.float32)))
    assert out_f32.shape == (B, 1)
    assert jnp.allclose(out_f32, ref, atol=1e-3, rtol=1e-3)

    # Default fast path (bf16 MXU operands, f32 accumulation + f32 elementwise).
    out_bf16 = jax.block_until_ready(
        lstm_model_forward(x, prepare_params(params)))
    assert out_bf16.shape == (B, 1)
    assert jnp.allclose(out_bf16, ref, atol=3e-2, rtol=3e-2)

    print("KERNEL_OK")
</pallas_src>

<mosaic_0001>
module attributes {stable_mosaic.version = 11 : i64} {
  func.func @_lstm_kernel(%arg0: memref<2x8x1xf32, #tpu.memory_space<vmem>>, %arg1: memref<1x256xf32, #tpu.memory_space<vmem>>, %arg2: memref<1x256xf32, #tpu.memory_space<vmem>>, %arg3: memref<64x256xf32, #tpu.memory_space<vmem>>, %arg4: memref<64x256xf32, #tpu.memory_space<vmem>>, %arg5: memref<64x256xf32, #tpu.memory_space<vmem>>, %arg6: memref<1x256xf32, #tpu.memory_space<vmem>>, %arg7: memref<1x64xf32, #tpu.memory_space<vmem>>, %arg8: memref<1x1xf32, #tpu.memory_space<vmem>>, %arg9: memref<2x1xf32, #tpu.memory_space<vmem>>) attributes {dimension_semantics = [], scalar_prefetch = 0 : i64, scratch_operands = 0 : i64, tpu.core_type = #tpu.core_type<tc>} {
    %c0 = arith.constant 0 : index
    %c0_0 = arith.constant 0 : index
    %c0_1 = arith.constant 0 : index
    %0 = vector.load %arg0[%c0, %c0_0, %c0_1] : memref<2x8x1xf32, #tpu.memory_space<vmem>>, vector<2x8x1xf32>
    %c0_2 = arith.constant 0 : index
    %c0_3 = arith.constant 0 : index
    %1 = vector.load %arg1[%c0_2, %c0_3] : memref<1x256xf32, #tpu.memory_space<vmem>>, vector<1x256xf32>
    %c0_4 = arith.constant 0 : index
    %c0_5 = arith.constant 0 : index
    %2 = vector.load %arg2[%c0_4, %c0_5] : memref<1x256xf32, #tpu.memory_space<vmem>>, vector<1x256xf32>
    %3 = vector.shape_cast %1 : vector<1x256xf32> to vector<1x1x256xf32>
    %4 = vector.broadcast %0 : vector<2x8x1xf32> to vector<2x8x256xf32>
    %5 = vector.broadcast %3 : vector<1x1x256xf32> to vector<2x8x256xf32>
    %6 = arith.mulf %4, %5 : vector<2x8x256xf32>
    %7 = vector.shape_cast %2 : vector<1x256xf32> to vector<1x1x256xf32>
    %8 = vector.broadcast %7 : vector<1x1x256xf32> to vector<2x8x256xf32>
    %9 = arith.addf %6, %8 : vector<2x8x256xf32>
    %10 = tpu.transpose %9, [1, 0, 2] : vector<2x8x256xf32> -> vector<8x2x256xf32>
    %c0_6 = arith.constant 0 : index
    %c0_7 = arith.constant 0 : index
    %11 = vector.load %arg3[%c0_6, %c0_7] : memref<64x256xf32, #tpu.memory_space<vmem>>, vector<64x256xf32>
    %c0_8 = arith.constant 0 : index
    %c0_9 = arith.constant 0 : index
    %12 = vector.load %arg4[%c0_8, %c0_9] : memref<64x256xf32, #tpu.memory_space<vmem>>, vector<64x256xf32>
    %c0_10 = arith.constant 0 : index
    %c0_11 = arith.constant 0 : index
    %13 = vector.load %arg5[%c0_10, %c0_11] : memref<64x256xf32, #tpu.memory_space<vmem>>, vector<64x256xf32>
    %c0_12 = arith.constant 0 : index
    %c0_13 = arith.constant 0 : index
    %14 = vector.load %arg6[%c0_12, %c0_13] : memref<1x256xf32, #tpu.memory_space<vmem>>, vector<1x256xf32>
    %15 = vector.shape_cast %14 : vector<1x256xf32> to vector<1x256xf32>
    %16 = vector.broadcast %15 : vector<1x256xf32> to vector<2x256xf32>
    %17 = tpu.iota {dimensions = array<i32: 1>} : vector<2x256xi32>
    %c192_i32 = arith.constant 192 : i32
    %18 = vector.broadcast %c192_i32 : i32 to vector<2x256xi32>
    %19 = arith.cmpi slt, %17, %18 : vector<2x256xi32>
    %cst = arith.constant 5.000000e-01 : f32
    %cst_14 = arith.constant 1.000000e+00 : f32
    %20 = vector.broadcast %cst : f32 to vector<2x256xf32>
    %21 = vector.broadcast %cst_14 : f32 to vector<2x256xf32>
    %22 = arith.select %19, %20, %21 : vector<2x256xi1>, vector<2x256xf32>
    %cst_15 = arith.constant 5.000000e-01 : f32
    %cst_16 = arith.constant 0.000000e+00 : f32
    %23 = vector.broadcast %cst_15 : f32 to vector<2x256xf32>
    %24 = vector.broadcast %cst_16 : f32 to vector<2x256xf32>
    %25 = arith.select %19, %23, %24 : vector<2x256xi1>, vector<2x256xf32>
    %cst_17 = arith.constant 0.000000e+00 : f32
    %26 = vector.broadcast %cst_17 : f32 to vector<2x64xf32>
    %27 = vector.extract_strided_slice %10 {offsets = [0, 0, 0], sizes = [1, 2, 256], strides = [1, 1, 1]} : vector<8x2x256xf32> to vector<1x2x256xf32>
    %28 = vector.shape_cast %27 : vector<1x2x256xf32> to vector<2x256xf32>
    %cst_18 = arith.constant dense<0.000000e+00> : vector<2x256xf32>
    %29 = tpu.matmul %26, %11, %cst_18 {dimension_numbers = #tpu.dot_dimension_numbers<[1], [0], [0], [1], [0, 0, 1, 1], [], []>} : vector<2x64xf32>, vector<64x256xf32>, vector<2x256xf32> -> vector<2x256xf32>
    %30 = arith.addf %28, %29 : vector<2x256xf32>
    %31 = arith.mulf %30, %22 : vector<2x256xf32>
    %32 = math.tanh %31 : vector<2x256xf32>
    %33 = arith.mulf %32, %22 : vector<2x256xf32>
    %34 = arith.addf %33, %25 : vector<2x256xf32>
    %35 = vector.extract_strided_slice %34 {offsets = [0, 0], sizes = [2, 64], strides = [1, 1]} : vector<2x256xf32> to vector<2x64xf32>
    %36 = vector.extract_strided_slice %34 {offsets = [0, 64], sizes = [2, 64], strides = [1, 1]} : vector<2x256xf32> to vector<2x64xf32>
    %37 = vector.extract_strided_slice %34 {offsets = [0, 128], sizes = [2, 64], strides = [1, 1]} : vector<2x256xf32> to vector<2x64xf32>
    %38 = vector.extract_strided_slice %34 {offsets = [0, 192], sizes = [2, 64], strides = [1, 1]} : vector<2x256xf32> to vector<2x64xf32>
    %39 = arith.mulf %36, %26 : vector<2x64xf32>
    %40 = arith.mulf %35, %38 : vector<2x64xf32>
    %41 = arith.addf %39, %40 : vector<2x64xf32>
    %42 = math.tanh %41 : vector<2x64xf32>
    %43 = arith.mulf %37, %42 : vector<2x64xf32>
    %cst_19 = arith.constant dense<0.000000e+00> : vector<2x256xf32>
    %44 = tpu.matmul %43, %12, %cst_19 {dimension_numbers = #tpu.dot_dimension_numbers<[1], [0], [0], [1], [0, 0, 1, 1], [], []>} : vector<2x64xf32>, vector<64x256xf32>, vector<2x256xf32> -> vector<2x256xf32>
    %45 = arith.addf %44, %16 : vector<2x256xf32>
    %46 = vector.extract_strided_slice %10 {offsets = [1, 0, 0], sizes = [1, 2, 256], strides = [1, 1, 1]} : vector<8x2x256xf32> to vector<1x2x256xf32>
    %47 = vector.shape_cast %46 : vector<1x2x256xf32> to vector<2x256xf32>
    %cst_20 = arith.constant dense<0.000000e+00> : vector<2x256xf32>
    %48 = tpu.matmul %43, %11, %cst_20 {dimension_numbers = #tpu.dot_dimension_numbers<[1], [0], [0], [1], [0, 0, 1, 1], [], []>} : vector<2x64xf32>, vector<64x256xf32>, vector<2x256xf32> -> vector<2x256xf32>
    %49 = arith.addf %47, %48 : vector<2x256xf32>
    %50 = arith.mulf %49, %22 : vector<2x256xf32>
    %51 = math.tanh %50 : vector<2x256xf32>
    %52 = arith.mulf %51, %22 : vector<2x256xf32>
    %53 = arith.addf %52, %25 : vector<2x256xf32>
    %54 = vector.extract_strided_slice %53 {offsets = [0, 0], sizes = [2, 64], strides = [1, 1]} : vector<2x256xf32> to vector<2x64xf32>
    %55 = vector.extract_strided_slice %53 {offsets = [0, 64], sizes = [2, 64], strides = [1, 1]} : vector<2x256xf32> to vector<2x64xf32>
    %56 = vector.extract_strided_slice %53 {offsets = [0, 128], sizes = [2, 64], strides = [1, 1]} : vector<2x256xf32> to vector<2x64xf32>
    %57 = vector.extract_strided_slice %53 {offsets = [0, 192], sizes = [2, 64], strides = [1, 1]} : vector<2x256xf32> to vector<2x64xf32>
    %58 = arith.mulf %55, %41 : vector<2x64xf32>
    %59 = arith.mulf %54, %57 : vector<2x64xf32>
    %60 = arith.addf %58, %59 : vector<2x64xf32>
    %61 = math.tanh %60 : vector<2x64xf32>
    %62 = arith.mulf %56, %61 : vector<2x64xf32>
    %cst_21 = arith.constant dense<0.000000e+00> : vector<2x256xf32>
    %63 = tpu.matmul %62, %12, %cst_21 {dimension_numbers = #tpu.dot_dimension_numbers<[1], [0], [0], [1], [0, 0, 1, 1], [], []>} : vector<2x64xf32>, vector<64x256xf32>, vector<2x256xf32> -> vector<2x256xf32>
    %64 = arith.addf %63, %16 : vector<2x256xf32>
    %65 = vector.extract_strided_slice %10 {offsets = [2, 0, 0], sizes = [1, 2, 256], strides = [1, 1, 1]} : vector<8x2x256xf32> to vector<1x2x256xf32>
    %66 = vector.shape_cast %65 : vector<1x2x256xf32> to vector<2x256xf32>
    %cst_22 = arith.constant dense<0.000000e+00> : vector<2x256xf32>
    %67 = tpu.matmul %62, %11, %cst_22 {dimension_numbers = #tpu.dot_dimension_numbers<[1], [0], [0], [1], [0, 0, 1, 1], [], []>} : vector<2x64xf32>, vector<64x256xf32>, vector<2x256xf32> -> vector<2x256xf32>
    %68 = arith.addf %66, %67 : vector<2x256xf32>
    %69 = arith.mulf %68, %22 : vector<2x256xf32>
    %70 = math.tanh %69 : vector<2x256xf32>
    %71 = arith.mulf %70, %22 : vector<2x256xf32>
    %72 = arith.addf %71, %25 : vector<2x256xf32>
    %73 = vector.extract_strided_slice %72 {offsets = [0, 0], sizes = [2, 64], strides = [1, 1]} : vector<2x256xf32> to vector<2x64xf32>
    %74 = vector.extract_strided_slice %72 {offsets = [0, 64], sizes = [2, 64], strides = [1, 1]} : vector<2x256xf32> to vector<2x64xf32>
    %75 = vector.extract_strided_slice %72 {offsets = [0, 128], sizes = [2, 64], strides = [1, 1]} : vector<2x256xf32> to vector<2x64xf32>
    %76 = vector.extract_strided_slice %72 {offsets = [0, 192], sizes = [2, 64], strides = [1, 1]} : vector<2x256xf32> to vector<2x64xf32>
    %77 = arith.mulf %74, %60 : vector<2x64xf32>
    %78 = arith.mulf %73, %76 : vector<2x64xf32>
    %79 = arith.addf %77, %78 : vector<2x64xf32>
    %80 = math.tanh %79 : vector<2x64xf32>
    %81 = arith.mulf %75, %80 : vector<2x64xf32>
    %cst_23 = arith.constant dense<0.000000e+00> : vector<2x256xf32>
    %82 = tpu.matmul %81, %12, %cst_23 {dimension_numbers = #tpu.dot_dimension_numbers<[1], [0], [0], [1], [0, 0, 1, 1], [], []>} : vector<2x64xf32>, vector<64x256xf32>, vector<2x256xf32> -> vector<2x256xf32>
    %83 = arith.addf %82, %16 : vector<2x256xf32>
    %84 = vector.extract_strided_slice %10 {offsets = [3, 0, 0], sizes = [1, 2, 256], strides = [1, 1, 1]} : vector<8x2x256xf32> to vector<1x2x256xf32>
    %85 = vector.shape_cast %84 : vector<1x2x256xf32> to vector<2x256xf32>
    %cst_24 = arith.constant dense<0.000000e+00> : vector<2x256xf32>
    %86 = tpu.matmul %81, %11, %cst_24 {dimension_numbers = #tpu.dot_dimension_numbers<[1], [0], [0], [1], [0, 0, 1, 1], [], []>} : vector<2x64xf32>, vector<64x256xf32>, vector<2x256xf32> -> vector<2x256xf32>
    %87 = arith.addf %85, %86 : vector<2x256xf32>
    %88 = arith.mulf %87, %22 : vector<2x256xf32>
    %89 = math.tanh %88 : vector<2x256xf32>
    %90 = arith.mulf %89, %22 : vector<2x256xf32>
    %91 = arith.addf %90, %25 : vector<2x256xf32>
    %92 = vector.extract_strided_slice %91 {offsets = [0, 0], sizes = [2, 64], strides = [1, 1]} : vector<2x256xf32> to vector<2x64xf32>
    %93 = vector.extract_strided_slice %91 {offsets = [0, 64], sizes = [2, 64], strides = [1, 1]} : vector<2x256xf32> to vector<2x64xf32>
    %94 = vector.extract_strided_slice %91 {offsets = [0, 128], sizes = [2, 64], strides = [1, 1]} : vector<2x256xf32> to vector<2x64xf32>
    %95 = vector.extract_strided_slice %91 {offsets = [0, 192], sizes = [2, 64], strides = [1, 1]} : vector<2x256xf32> to vector<2x64xf32>
    %96 = arith.mulf %93, %79 : vector<2x64xf32>
    %97 = arith.mulf %92, %95 : vector<2x64xf32>
    %98 = arith.addf %96, %97 : vector<2x64xf32>
    %99 = math.tanh %98 : vector<2x64xf32>
    %100 = arith.mulf %94, %99 : vector<2x64xf32>
    %cst_25 = arith.constant dense<0.000000e+00> : vector<2x256xf32>
    %101 = tpu.matmul %100, %12, %cst_25 {dimension_numbers = #tpu.dot_dimension_numbers<[1], [0], [0], [1], [0, 0, 1, 1], [], []>} : vector<2x64xf32>, vector<64x256xf32>, vector<2x256xf32> -> vector<2x256xf32>
    %102 = arith.addf %101, %16 : vector<2x256xf32>
    %103 = vector.extract_strided_slice %10 {offsets = [4, 0, 0], sizes = [1, 2, 256], strides = [1, 1, 1]} : vector<8x2x256xf32> to vector<1x2x256xf32>
    %104 = vector.shape_cast %103 : vector<1x2x256xf32> to vector<2x256xf32>
    %cst_26 = arith.constant dense<0.000000e+00> : vector<2x256xf32>
    %105 = tpu.matmul %100, %11, %cst_26 {dimension_numbers = #tpu.dot_dimension_numbers<[1], [0], [0], [1], [0, 0, 1, 1], [], []>} : vector<2x64xf32>, vector<64x256xf32>, vector<2x256xf32> -> vector<2x256xf32>
    %106 = arith.addf %104, %105 : vector<2x256xf32>
    %107 = arith.mulf %106, %22 : vector<2x256xf32>
    %108 = math.tanh %107 : vector<2x256xf32>
    %109 = arith.mulf %108, %22 : vector<2x256xf32>
    %110 = arith.addf %109, %25 : vector<2x256xf32>
    %111 = vector.extract_strided_slice %110 {offsets = [0, 0], sizes = [2, 64], strides = [1, 1]} : vector<2x256xf32> to vector<2x64xf32>
    %112 = vector.extract_strided_slice %110 {offsets = [0, 64], sizes = [2, 64], strides = [1, 1]} : vector<2x256xf32> to vector<2x64xf32>
    %113 = vector.extract_strided_slice %110 {offsets = [0, 128], sizes = [2, 64], strides = [1, 1]} : vector<2x256xf32> to vector<2x64xf32>
    %114 = vector.extract_strided_slice %110 {offsets = [0, 192], sizes = [2, 64], strides = [1, 1]} : vector<2x256xf32> to vector<2x64xf32>
    %115 = arith.mulf %112, %98 : vector<2x64xf32>
    %116 = arith.mulf %111, %114 : vector<2x64xf32>
    %117 = arith.addf %115, %116 : vector<2x64xf32>
    %118 = math.tanh %117 : vector<2x64xf32>
    %119 = arith.mulf %113, %118 : vector<2x64xf32>
    %cst_27 = arith.constant dense<0.000000e+00> : vector<2x256xf32>
    %120 = tpu.matmul %119, %12, %cst_27 {dimension_numbers = #tpu.dot_dimension_numbers<[1], [0], [0], [1], [0, 0, 1, 1], [], []>} : vector<2x64xf32>, vector<64x256xf32>, vector<2x256xf32> -> vector<2x256xf32>
    %121 = arith.addf %120, %16 : vector<2x256xf32>
    %122 = vector.extract_strided_slice %10 {offsets = [5, 0, 0], sizes = [1, 2, 256], strides = [1, 1, 1]} : vector<8x2x256xf32> to vector<1x2x256xf32>
    %123 = vector.shape_cast %122 : vector<1x2x256xf32> to vector<2x256xf32>
    %cst_28 = arith.constant dense<0.000000e+00> : vector<2x256xf32>
    %124 = tpu.matmul %119, %11, %cst_28 {dimension_numbers = #tpu.dot_dimension_numbers<[1], [0], [0], [1], [0, 0, 1, 1], [], []>} : vector<2x64xf32>, vector<64x256xf32>, vector<2x256xf32> -> vector<2x256xf32>
    %125 = arith.addf %123, %124 : vector<2x256xf32>
    %126 = arith.mulf %125, %22 : vector<2x256xf32>
    %127 = math.tanh %126 : vector<2x256xf32>
    %128 = arith.mulf %127, %22 : vector<2x256xf32>
    %129 = arith.addf %128, %25 : vector<2x256xf32>
    %130 = vector.extract_strided_slice %129 {offsets = [0, 0], sizes = [2, 64], strides = [1, 1]} : vector<2x256xf32> to vector<2x64xf32>
    %131 = vector.extract_strided_slice %129 {offsets = [0, 64], sizes = [2, 64], strides = [1, 1]} : vector<2x256xf32> to vector<2x64xf32>
    %132 = vector.extract_strided_slice %129 {offsets = [0, 128], sizes = [2, 64], strides = [1, 1]} : vector<2x256xf32> to vector<2x64xf32>
    %133 = vector.extract_strided_slice %129 {offsets = [0, 192], sizes = [2, 64], strides = [1, 1]} : vector<2x256xf32> to vector<2x64xf32>
    %134 = arith.mulf %131, %117 : vector<2x64xf32>
    %135 = arith.mulf %130, %133 : vector<2x64xf32>
    %136 = arith.addf %134, %135 : vector<2x64xf32>
    %137 = math.tanh %136 : vector<2x64xf32>
    %138 = arith.mulf %132, %137 : vector<2x64xf32>
    %cst_29 = arith.constant dense<0.000000e+00> : vector<2x256xf32>
    %139 = tpu.matmul %138, %12, %cst_29 {dimension_numbers = #tpu.dot_dimension_numbers<[1], [0], [0], [1], [0, 0, 1, 1], [], []>} : vector<2x64xf32>, vector<64x256xf32>, vector<2x256xf32> -> vector<2x256xf32>
    %140 = arith.addf %139, %16 : vector<2x256xf32>
    %141 = vector.extract_strided_slice %10 {offsets = [6, 0, 0], sizes = [1, 2, 256], strides = [1, 1, 1]} : vector<8x2x256xf32> to vector<1x2x256xf32>
    %142 = vector.shape_cast %141 : vector<1x2x256xf32> to vector<2x256xf32>
    %cst_30 = arith.constant dense<0.000000e+00> : vector<2x256xf32>
    %143 = tpu.matmul %138, %11, %cst_30 {dimension_numbers = #tpu.dot_dimension_numbers<[1], [0], [0], [1], [0, 0, 1, 1], [], []>} : vector<2x64xf32>, vector<64x256xf32>, vector<2x256xf32> -> vector<2x256xf32>
    %144 = arith.addf %142, %143 : vector<2x256xf32>
    %145 = arith.mulf %144, %22 : vector<2x256xf32>
    %146 = math.tanh %145 : vector<2x256xf32>
    %147 = arith.mulf %146, %22 : vector<2x256xf32>
    %148 = arith.addf %147, %25 : vector<2x256xf32>
    %149 = vector.extract_strided_slice %148 {offsets = [0, 0], sizes = [2, 64], strides = [1, 1]} : vector<2x256xf32> to vector<2x64xf32>
    %150 = vector.extract_strided_slice %148 {offsets = [0, 64], sizes = [2, 64], strides = [1, 1]} : vector<2x256xf32> to vector<2x64xf32>
    %151 = vector.extract_strided_slice %148 {offsets = [0, 128], sizes = [2, 64], strides = [1, 1]} : vector<2x256xf32> to vector<2x64xf32>
    %152 = vector.extract_strided_slice %148 {offsets = [0, 192], sizes = [2, 64], strides = [1, 1]} : vector<2x256xf32> to vector<2x64xf32>
    %153 = arith.mulf %150, %136 : vector<2x64xf32>
    %154 = arith.mulf %149, %152 : vector<2x64xf32>
    %155 = arith.addf %153, %154 : vector<2x64xf32>
    %156 = math.tanh %155 : vector<2x64xf32>
    %157 = arith.mulf %151, %156 : vector<2x64xf32>
    %cst_31 = arith.constant dense<0.000000e+00> : vector<2x256xf32>
    %158 = tpu.matmul %157, %12, %cst_31 {dimension_numbers = #tpu.dot_dimension_numbers<[1], [0], [0], [1], [0, 0, 1, 1], [], []>} : vector<2x64xf32>, vector<64x256xf32>, vector<2x256xf32> -> vector<2x256xf32>
    %159 = arith.addf %158, %16 : vector<2x256xf32>
    %160 = vector.extract_strided_slice %10 {offsets = [7, 0, 0], sizes = [1, 2, 256], strides = [1, 1, 1]} : vector<8x2x256xf32> to vector<1x2x256xf32>
    %161 = vector.shape_cast %160 : vector<1x2x256xf32> to vector<2x256xf32>
    %cst_32 = arith.constant dense<0.000000e+00> : vector<2x256xf32>
    %162 = tpu.matmul %157, %11, %cst_32 {dimension_numbers = #tpu.dot_dimension_numbers<[1], [0], [0], [1], [0, 0, 1, 1], [], []>} : vector<2x64xf32>, vector<64x256xf32>, vector<2x256xf32> -> vector<2x256xf32>
    %163 = arith.addf %161, %162 : vector<2x256xf32>
    %164 = arith.mulf %163, %22 : vector<2x256xf32>
    %165 = math.tanh %164 : vector<2x256xf32>
    %166 = arith.mulf %165, %22 : vector<2x256xf32>
    %167 = arith.addf %166, %25 : vector<2x256xf32>
    %168 = vector.extract_strided_slice %167 {offsets = [0, 0], sizes = [2, 64], strides = [1, 1]} : vector<2x256xf32> to vector<2x64xf32>
    %169 = vector.extract_strided_slice %167 {offsets = [0, 64], sizes = [2, 64], strides = [1, 1]} : vector<2x256xf32> to vector<2x64xf32>
    %170 = vector.extract_strided_slice %167 {offsets = [0, 128], sizes = [2, 64], strides = [1, 1]} : vector<2x256xf32> to vector<2x64xf32>
    %171 = vector.extract_strided_slice %167 {offsets = [0, 192], sizes = [2, 64], strides = [1, 1]} : vector<2x256xf32> to vector<2x64xf32>
    %172 = arith.mulf %169, %155 : vector<2x64xf32>
    %173 = arith.mulf %168, %171 : vector<2x64xf32>
    %174 = arith.addf %172, %173 : vector<2x64xf32>
    %175 = math.tanh %174 : vector<2x64xf32>
    %176 = arith.mulf %170, %175 : vector<2x64xf32>
    %cst_33 = arith.constant dense<0.000000e+00> : vector<2x256xf32>
    %177 = tpu.matmul %176, %12, %cst_33 {dimension_numbers = #tpu.dot_dimension_numbers<[1], [0], [0], [1], [0, 0, 1, 1], [], []>} : vector<2x64xf32>, vector<64x256xf32>, vector<2x256xf32> -> vector<2x256xf32>
    %178 = arith.addf %177, %16 : vector<2x256xf32>
    %cst_34 = arith.constant dense<0.000000e+00> : vector<2x256xf32>
    %179 = tpu.matmul %26, %13, %cst_34 {dimension_numbers = #tpu.dot_dimension_numbers<[1], [0], [0], [1], [0, 0, 1, 1], [], []>} : vector<2x64xf32>, vector<64x256xf32>, vector<2x256xf32> -> vector<2x256xf32>
    %180 = arith.addf %45, %179 : vector<2x256xf32>
    %181 = arith.mulf %180, %22 : vector<2x256xf32>
    %182 = math.tanh %181 : vector<2x256xf32>
    %183 = arith.mulf %182, %22 : vector<2x256xf32>
    %184 = arith.addf %183, %25 : vector<2x256xf32>
    %185 = vector.extract_strided_slice %184 {offsets = [0, 0], sizes = [2, 64], strides = [1, 1]} : vector<2x256xf32> to vector<2x64xf32>
    %186 = vector.extract_strided_slice %184 {offsets = [0, 64], sizes = [2, 64], strides = [1, 1]} : vector<2x256xf32> to vector<2x64xf32>
    %187 = vector.extract_strided_slice %184 {offsets = [0, 128], sizes = [2, 64], strides = [1, 1]} : vector<2x256xf32> to vector<2x64xf32>
    %188 = vector.extract_strided_slice %184 {offsets = [0, 192], sizes = [2, 64], strides = [1, 1]} : vector<2x256xf32> to vector<2x64xf32>
    %189 = arith.mulf %186, %26 : vector<2x64xf32>
    %190 = arith.mulf %185, %188 : vector<2x64xf32>
    %191 = arith.addf %189, %190 : vector<2x64xf32>
    %192 = math.tanh %191 : vector<2x64xf32>
    %193 = arith.mulf %187, %192 : vector<2x64xf32>
    %cst_35 = arith.constant dense<0.000000e+00> : vector<2x256xf32>
    %194 = tpu.matmul %193, %13, %cst_35 {dimension_numbers = #tpu.dot_dimension_numbers<[1], [0], [0], [1], [0, 0, 1, 1], [], []>} : vector<2x64xf32>, vector<64x256xf32>, vector<2x256xf32> -> vector<2x256xf32>
    %195 = arith.addf %64, %194 : vector<2x256xf32>
    %196 = arith.mulf %195, %22 : vector<2x256xf32>
    %197 = math.tanh %196 : vector<2x256xf32>
    %198 = arith.mulf %197, %22 : vector<2x256xf32>
    %199 = arith.addf %198, %25 : vector<2x256xf32>
    %200 = vector.extract_strided_slice %199 {offsets = [0, 0], sizes = [2, 64], strides = [1, 1]} : vector<2x256xf32> to vector<2x64xf32>
    %201 = vector.extract_strided_slice %199 {offsets = [0, 64], sizes = [2, 64], strides = [1, 1]} : vector<2x256xf32> to vector<2x64xf32>
    %202 = vector.extract_strided_slice %199 {offsets = [0, 128], sizes = [2, 64], strides = [1, 1]} : vector<2x256xf32> to vector<2x64xf32>
    %203 = vector.extract_strided_slice %199 {offsets = [0, 192], sizes = [2, 64], strides = [1, 1]} : vector<2x256xf32> to vector<2x64xf32>
    %204 = arith.mulf %201, %191 : vector<2x64xf32>
    %205 = arith.mulf %200, %203 : vector<2x64xf32>
    %206 = arith.addf %204, %205 : vector<2x64xf32>
    %207 = math.tanh %206 : vector<2x64xf32>
    %208 = arith.mulf %202, %207 : vector<2x64xf32>
    %cst_36 = arith.constant dense<0.000000e+00> : vector<2x256xf32>
    %209 = tpu.matmul %208, %13, %cst_36 {dimension_numbers = #tpu.dot_dimension_numbers<[1], [0], [0], [1], [0, 0, 1, 1], [], []>} : vector<2x64xf32>, vector<64x256xf32>, vector<2x256xf32> -> vector<2x256xf32>
    %210 = arith.addf %83, %209 : vector<2x256xf32>
    %211 = arith.mulf %210, %22 : vector<2x256xf32>
    %212 = math.tanh %211 : vector<2x256xf32>
    %213 = arith.mulf %212, %22 : vector<2x256xf32>
    %214 = arith.addf %213, %25 : vector<2x256xf32>
    %215 = vector.extract_strided_slice %214 {offsets = [0, 0], sizes = [2, 64], strides = [1, 1]} : vector<2x256xf32> to vector<2x64xf32>
    %216 = vector.extract_strided_slice %214 {offsets = [0, 64], sizes = [2, 64], strides = [1, 1]} : vector<2x256xf32> to vector<2x64xf32>
    %217 = vector.extract_strided_slice %214 {offsets = [0, 128], sizes = [2, 64], strides = [1, 1]} : vector<2x256xf32> to vector<2x64xf32>
    %218 = vector.extract_strided_slice %214 {offsets = [0, 192], sizes = [2, 64], strides = [1, 1]} : vector<2x256xf32> to vector<2x64xf32>
    %219 = arith.mulf %216, %206 : vector<2x64xf32>
    %220 = arith.mulf %215, %218 : vector<2x64xf32>
    %221 = arith.addf %219, %220 : vector<2x64xf32>
    %222 = math.tanh %221 : vector<2x64xf32>
    %223 = arith.mulf %217, %222 : vector<2x64xf32>
    %cst_37 = arith.constant dense<0.000000e+00> : vector<2x256xf32>
    %224 = tpu.matmul %223, %13, %cst_37 {dimension_numbers = #tpu.dot_dimension_numbers<[1], [0], [0], [1], [0, 0, 1, 1], [], []>} : vector<2x64xf32>, vector<64x256xf32>, vector<2x256xf32> -> vector<2x256xf32>
    %225 = arith.addf %102, %224 : vector<2x256xf32>
    %226 = arith.mulf %225, %22 : vector<2x256xf32>
    %227 = math.tanh %226 : vector<2x256xf32>
    %228 = arith.mulf %227, %22 : vector<2x256xf32>
    %229 = arith.addf %228, %25 : vector<2x256xf32>
    %230 = vector.extract_strided_slice %229 {offsets = [0, 0], sizes = [2, 64], strides = [1, 1]} : vector<2x256xf32> to vector<2x64xf32>
    %231 = vector.extract_strided_slice %229 {offsets = [0, 64], sizes = [2, 64], strides = [1, 1]} : vector<2x256xf32> to vector<2x64xf32>
    %232 = vector.extract_strided_slice %229 {offsets = [0, 128], sizes = [2, 64], strides = [1, 1]} : vector<2x256xf32> to vector<2x64xf32>
    %233 = vector.extract_strided_slice %229 {offsets = [0, 192], sizes = [2, 64], strides = [1, 1]} : vector<2x256xf32> to vector<2x64xf32>
    %234 = arith.mulf %231, %221 : vector<2x64xf32>
    %235 = arith.mulf %230, %233 : vector<2x64xf32>
    %236 = arith.addf %234, %235 : vector<2x64xf32>
    %237 = math.tanh %236 : vector<2x64xf32>
    %238 = arith.mulf %232, %237 : vector<2x64xf32>
    %cst_38 = arith.constant dense<0.000000e+00> : vector<2x256xf32>
    %239 = tpu.matmul %238, %13, %cst_38 {dimension_numbers = #tpu.dot_dimension_numbers<[1], [0], [0], [1], [0, 0, 1, 1], [], []>} : vector<2x64xf32>, vector<64x256xf32>, vector<2x256xf32> -> vector<2x256xf32>
    %240 = arith.addf %121, %239 : vector<2x256xf32>
    %241 = arith.mulf %240, %22 : vector<2x256xf32>
    %242 = math.tanh %241 : vector<2x256xf32>
    %243 = arith.mulf %242, %22 : vector<2x256xf32>
    %244 = arith.addf %243, %25 : vector<2x256xf32>
    %245 = vector.extract_strided_slice %244 {offsets = [0, 0], sizes = [2, 64], strides = [1, 1]} : vector<2x256xf32> to vector<2x64xf32>
    %246 = vector.extract_strided_slice %244 {offsets = [0, 64], sizes = [2, 64], strides = [1, 1]} : vector<2x256xf32> to vector<2x64xf32>
    %247 = vector.extract_strided_slice %244 {offsets = [0, 128], sizes = [2, 64], strides = [1, 1]} : vector<2x256xf32> to vector<2x64xf32>
    %248 = vector.extract_strided_slice %244 {offsets = [0, 192], sizes = [2, 64], strides = [1, 1]} : vector<2x256xf32> to vector<2x64xf32>
    %249 = arith.mulf %246, %236 : vector<2x64xf32>
    %250 = arith.mulf %245, %248 : vector<2x64xf32>
    %251 = arith.addf %249, %250 : vector<2x64xf32>
    %252 = math.tanh %251 : vector<2x64xf32>
    %253 = arith.mulf %247, %252 : vector<2x64xf32>
    %cst_39 = arith.constant dense<0.000000e+00> : vector<2x256xf32>
    %254 = tpu.matmul %253, %13, %cst_39 {dimension_numbers = #tpu.dot_dimension_numbers<[1], [0], [0], [1], [0, 0, 1, 1], [], []>} : vector<2x64xf32>, vector<64x256xf32>, vector<2x256xf32> -> vector<2x256xf32>
    %255 = arith.addf %140, %254 : vector<2x256xf32>
    %256 = arith.mulf %255, %22 : vector<2x256xf32>
    %257 = math.tanh %256 : vector<2x256xf32>
    %258 = arith.mulf %257, %22 : vector<2x256xf32>
    %259 = arith.addf %258, %25 : vector<2x256xf32>
    %260 = vector.extract_strided_slice %259 {offsets = [0, 0], sizes = [2, 64], strides = [1, 1]} : vector<2x256xf32> to vector<2x64xf32>
    %261 = vector.extract_strided_slice %259 {offsets = [0, 64], sizes = [2, 64], strides = [1, 1]} : vector<2x256xf32> to vector<2x64xf32>
    %262 = vector.extract_strided_slice %259 {offsets = [0, 128], sizes = [2, 64], strides = [1, 1]} : vector<2x256xf32> to vector<2x64xf32>
    %263 = vector.extract_strided_slice %259 {offsets = [0, 192], sizes = [2, 64], strides = [1, 1]} : vector<2x256xf32> to vector<2x64xf32>
    %264 = arith.mulf %261, %251 : vector<2x64xf32>
    %265 = arith.mulf %260, %263 : vector<2x64xf32>
    %266 = arith.addf %264, %265 : vector<2x64xf32>
    %267 = math.tanh %266 : vector<2x64xf32>
    %268 = arith.mulf %262, %267 : vector<2x64xf32>
    %cst_40 = arith.constant dense<0.000000e+00> : vector<2x256xf32>
    %269 = tpu.matmul %268, %13, %cst_40 {dimension_numbers = #tpu.dot_dimension_numbers<[1], [0], [0], [1], [0, 0, 1, 1], [], []>} : vector<2x64xf32>, vector<64x256xf32>, vector<2x256xf32> -> vector<2x256xf32>
    %270 = arith.addf %159, %269 : vector<2x256xf32>
    %271 = arith.mulf %270, %22 : vector<2x256xf32>
    %272 = math.tanh %271 : vector<2x256xf32>
    %273 = arith.mulf %272, %22 : vector<2x256xf32>
    %274 = arith.addf %273, %25 : vector<2x256xf32>
    %275 = vector.extract_strided_slice %274 {offsets = [0, 0], sizes = [2, 64], strides = [1, 1]} : vector<2x256xf32> to vector<2x64xf32>
    %276 = vector.extract_strided_slice %274 {offsets = [0, 64], sizes = [2, 64], strides = [1, 1]} : vector<2x256xf32> to vector<2x64xf32>
    %277 = vector.extract_strided_slice %274 {offsets = [0, 128], sizes = [2, 64], strides = [1, 1]} : vector<2x256xf32> to vector<2x64xf32>
    %278 = vector.extract_strided_slice %274 {offsets = [0, 192], sizes = [2, 64], strides = [1, 1]} : vector<2x256xf32> to vector<2x64xf32>
    %279 = arith.mulf %276, %266 : vector<2x64xf32>
    %280 = arith.mulf %275, %278 : vector<2x64xf32>
    %281 = arith.addf %279, %280 : vector<2x64xf32>
    %282 = math.tanh %281 : vector<2x64xf32>
    %283 = arith.mulf %277, %282 : vector<2x64xf32>
    %cst_41 = arith.constant dense<0.000000e+00> : vector<2x256xf32>
    %284 = tpu.matmul %283, %13, %cst_41 {dimension_numbers = #tpu.dot_dimension_numbers<[1], [0], [0], [1], [0, 0, 1, 1], [], []>} : vector<2x64xf32>, vector<64x256xf32>, vector<2x256xf32> -> vector<2x256xf32>
    %285 = arith.addf %178, %284 : vector<2x256xf32>
    %286 = arith.mulf %285, %22 : vector<2x256xf32>
    %287 = math.tanh %286 : vector<2x256xf32>
    %288 = arith.mulf %287, %22 : vector<2x256xf32>
    %289 = arith.addf %288, %25 : vector<2x256xf32>
    %290 = vector.extract_strided_slice %289 {offsets = [0, 0], sizes = [2, 64], strides = [1, 1]} : vector<2x256xf32> to vector<2x64xf32>
    %291 = vector.extract_strided_slice %289 {offsets = [0, 64], sizes = [2, 64], strides = [1, 1]} : vector<2x256xf32> to vector<2x64xf32>
    %292 = vector.extract_strided_slice %289 {offsets = [0, 128], sizes = [2, 64], strides = [1, 1]} : vector<2x256xf32> to vector<2x64xf32>
    %293 = vector.extract_strided_slice %289 {offsets = [0, 192], sizes = [2, 64], strides = [1, 1]} : vector<2x256xf32> to vector<2x64xf32>
    %294 = arith.mulf %291, %281 : vector<2x64xf32>
    %295 = arith.mulf %290, %293 : vector<2x64xf32>
    %296 = arith.addf %294, %295 : vector<2x64xf32>
    %297 = math.tanh %296 : vector<2x64xf32>
    %298 = arith.mulf %292, %297 : vector<2x64xf32>
    %c0_42 = arith.constant 0 : index
    %c0_43 = arith.constant 0 : index
    %299 = vector.load %arg7[%c0_42, %c0_43] : memref<1x64xf32, #tpu.memory_space<vmem>>, vector<1x64xf32>
    %300 = vector.broadcast %299 : vector<1x64xf32> to vector<2x64xf32>
    %301 = arith.mulf %298, %300 : vector<2x64xf32>
    %cst_44 = arith.constant dense<0.000000e+00> : vector<2xf32>
    %302 = vector.multi_reduction <add>, %301, %cst_44 [1] : vector<2x64xf32> to vector<2xf32>
    %303 = vector.shape_cast %302 : vector<2xf32> to vector<2x1xf32>
    %c0_45 = arith.constant 0 : index
    %c0_46 = arith.constant 0 : index
    %304 = vector.load %arg8[%c0_45, %c0_46] : memref<1x1xf32, #tpu.memory_space<vmem>>, vector<1x1xf32>
    %305 = vector.broadcast %304 : vector<1x1xf32> to vector<2x1xf32>
    %306 = arith.addf %303, %305 : vector<2x1xf32>
    %c0_47 = arith.constant 0 : index
    %c0_48 = arith.constant 0 : index
    %307 = vector.load %arg9[%c0_47, %c0_48] : memref<2x1xf32, #tpu.memory_space<vmem>>, vector<2x1xf32>
    tpu.vector_store %arg9[%c0_47, %c0_48], %306 {strides = array<i32>} : memref<2x1xf32, #tpu.memory_space<vmem>>, vector<2x1xf32>,
    return
  }
}

</mosaic_0001>

<llo_original>
// kernel: tpu_custom_call.1
$region0: #{tpu_custom_call.1}
  #allocation0 [shape = 'u32[]', space=smem, size = 0x4, offset = 0x4, fixed_abs, tag = 'smem constant byte address 0x4 - core index']
  #allocation1 [shape = 'u32[144,128]{1,0:T(1,128)}', space=vmem, size = 0x12000, scoped, tag = 'internal scratch']
  #allocation2 [shape = 'f32[1,1]{1,0:T(1,128)S(1)}', space=vmem, size = 0x200, scoped, tag = 'scoped memory for tpu_custom_call.1']
  %s0 = inlined_call_operand.vmem [shape: f32[2,8,1], index: 0, kind: input, shape index: {}]
  %s1 = inlined_call_operand.vmem [shape: f32[1,256], index: 1, kind: input, shape index: {}]
  %s2 = inlined_call_operand.vmem [shape: f32[1,256], index: 2, kind: input, shape index: {}]
  %s3 = inlined_call_operand.hbm [shape: f32[64,256], index: 3, kind: input, shape index: {}]
  %s4 = inlined_call_operand.hbm [shape: f32[64,256], index: 4, kind: input, shape index: {}]
  %s5 = inlined_call_operand.hbm [shape: f32[64,256], index: 5, kind: input, shape index: {}]
  %s6 = inlined_call_operand.vmem [shape: f32[1,256], index: 6, kind: input, shape index: {}]
  %s7 = inlined_call_operand.vmem [shape: f32[1,64], index: 7, kind: input, shape index: {}]
  %s8 = inlined_call_operand.<no memory space> [shape: f32[1,1], index: 8, kind: input, shape index: {}]
  %s9 = inlined_call_operand.vmem [shape: f32[2,1], index: 9, kind: output, shape index: {}]
  %s10 = sld [smem:[#allocation0]]
  $region58: #{tpu_custom_call.1} parent=0
    _
  %s12 = ssub.s32 1, %s10
  %s13 = scalar_select 0, %s12, %s10
  %v14 = vstv %s8
  %15 = vst [vmem:[#allocation2] sm:$0x1] %v14
  $region1: #{tpu_custom_call.1} parent=0
    #allocation3 [shape = 'u8[65536]{0}', space=vmem, size = 0x10000, scoped, tag = 'input window, operand 3, single buffered']
    #allocation4 [shape = 's32[1]{0}', space=sflag, size = 0x4, scoped, tag = 'scoped memory for tpu_custom_call.1']
    #allocation5 [shape = 'u8[65536]{0}', space=vmem, size = 0x10000, scoped, tag = 'input window, operand 4, single buffered']
    #allocation6 [shape = 's32[1]{0}', space=sflag, size = 0x4, scoped, tag = 'scoped memory for tpu_custom_call.1']
    #allocation7 [shape = 'u8[65536]{0}', space=vmem, size = 0x10000, scoped, tag = 'input window, operand 5, single buffered']
    %16 = vsyncpa [#allocation4], 0
    %17 = vsyncpa [#allocation6], 0
    // Predicated region
    $region2: #{tpu_custom_call.1} parent=1 // pred_check
      _
    $region3: #{tpu_custom_call.1} parent=1 // pred_check_branch
      %19 = sbr.rel (0) target = $region5
    $region4: #{tpu_custom_call.1} parent=1 // pred_region
      _
    $region5: #{tpu_custom_call.1} parent=1 // pred_fallthru
      _
    // Predicated region
    $region6: #{tpu_custom_call.1} parent=1 // pred_check
      _
    $region7: #{tpu_custom_call.1} parent=1 // pred_check_branch
      %21 = sbr.rel (0) target = $region9
    $region8: #{tpu_custom_call.1} parent=1 // pred_region
      _
    $region9: #{tpu_custom_call.1} parent=1 // pred_fallthru
      _
    // Predicated region
    $region10: #{tpu_custom_call.1} parent=1 // pred_check
      _
    $region11: #{tpu_custom_call.1} parent=1 // pred_check_branch
      %23 = sbr.rel (0) target = $region13
    $region12: #{tpu_custom_call.1} parent=1 // pred_region
      _
    $region13: #{tpu_custom_call.1} parent=1 // pred_fallthru
      _
    // Predicated region
    $region14: #{tpu_custom_call.1} parent=1 // pred_check
      _
    $region15: #{tpu_custom_call.1} parent=1 // pred_check_branch
      %25 = sbr.rel (0) target = $region17
    $region16: #{tpu_custom_call.1} parent=1 // pred_region
      %s27 = ssub.s32 2048, 2048
      %28 = vsyncadd [#allocation4], %s27
      %s29 = sshll.u32 [#allocation3], 4
      %s30 = int_to_ptr.vmem [resolvable:$true] %s29
      %35 = dma.hbm_to_vmem [thread:$0]  %s3, 2048, %s30, [#allocation4], 256, 256, 16
    $region17: #{tpu_custom_call.1} parent=1 // pred_fallthru
      _
    // Predicated region
    $region18: #{tpu_custom_call.1} parent=1 // pred_check
      _
    $region19: #{tpu_custom_call.1} parent=1 // pred_check_branch
      %37 = sbr.rel (0) target = $region21
    $region20: #{tpu_custom_call.1} parent=1 // pred_region
      %s39 = ssub.s32 2048, 2048
      %40 = vsyncadd [#allocation6], %s39
      %s41 = sshll.u32 [#allocation5], 4
      %s42 = int_to_ptr.vmem [resolvable:$true] %s41
      %47 = dma.hbm_to_vmem [thread:$0]  %s4, 2048, %s42, [#allocation6], 256, 256, 16
    $region21: #{tpu_custom_call.1} parent=1 // pred_fallthru
      _
    // Predicated region
    $region22: #{tpu_custom_call.1} parent=1 // pred_check
      _
    $region23: #{tpu_custom_call.1} parent=1 // pred_check_branch
      %49 = sbr.rel (0) target = $region25
    $region24: #{tpu_custom_call.1} parent=1 // pred_region
      %s51 = ssub.s32 2048, 2048
      %52 = vsyncadd [#allocation6], %s51
      %s53 = sshll.u32 [#allocation7], 4
      %s54 = int_to_ptr.vmem [resolvable:$true] %s53
      %59 = dma.hbm_to_vmem [thread:$0]  %s5, 2048, %s54, [#allocation6], 256, 256, 16
    $region25: #{tpu_custom_call.1} parent=1 // pred_fallthru
      _
    // Predicated region
    $region26: #{tpu_custom_call.1} parent=1 // pred_check
      _
    $region27: #{tpu_custom_call.1} parent=1 // pred_check_branch
      %61 = sbr.rel (0) target = $region29
    $region28: #{tpu_custom_call.1} parent=1 // pred_region
      _
    $region29: #{tpu_custom_call.1} parent=1 // pred_fallthru
      _
    // Predicated region
    $region30: #{tpu_custom_call.1} parent=1 // pred_check
      _
    $region31: #{tpu_custom_call.1} parent=1 // pred_check_branch
      %63 = sbr.rel (0) target = $region33
    $region32: #{tpu_custom_call.1} parent=1 // pred_region
      _
    $region33: #{tpu_custom_call.1} parent=1 // pred_fallthru
      _
    // Predicated region
    $region34: #{tpu_custom_call.1} parent=1 // pred_check
      _
    $region35: #{tpu_custom_call.1} parent=1 // pred_check_branch
      %65 = sbr.rel (0) target = $region37
    $region36: #{tpu_custom_call.1} parent=1 // pred_region
      _
    $region37: #{tpu_custom_call.1} parent=1 // pred_fallthru
      _
    // Predicated region
    $region38: #{tpu_custom_call.1} parent=1 // pred_check
      _
    $region39: #{tpu_custom_call.1} parent=1 // pred_check_branch
      %67 = sbr.rel (0) target = $region41
    $region40: #{tpu_custom_call.1} parent=1 // pred_region
      %68 = dma.done [#allocation4], 2048
    $region41: #{tpu_custom_call.1} parent=1 // pred_fallthru
      _
    // Predicated region
    $region42: #{tpu_custom_call.1} parent=1 // pred_check
      _
    $region43: #{tpu_custom_call.1} parent=1 // pred_check_branch
      %70 = sbr.rel (0) target = $region45
    $region44: #{tpu_custom_call.1} parent=1 // pred_region
      %71 = dma.done [#allocation6], 2048
    $region45: #{tpu_custom_call.1} parent=1 // pred_fallthru
      _
    // Predicated region
    $region46: #{tpu_custom_call.1} parent=1 // pred_check
      _
    $region47: #{tpu_custom_call.1} parent=1 // pred_check_branch
      %73 = sbr.rel (0) target = $region49
    $region48: #{tpu_custom_call.1} parent=1 // pred_region
      %74 = dma.done [#allocation6], 2048
    $region49: #{tpu_custom_call.1} parent=1 // pred_fallthru
      _
    %v75 = vld [vmem:[%s0] sm:$0xff]
    %v76 = vld [vmem:[%s0 + $0x8] sm:$0xff]
    %v77 = vld [vmem:[%s1] sm:$0x3]
    %v78 = vld [vmem:[%s2] sm:$0x3]
    %80 = vset.pattern.permute.xlu0 0
    %81 = vperm.xlu0 %80, %v75
    %v82 = vpop.permute.xlu0 %81
    %85 = vset.pattern.permute.xlu0 0
    %86 = vperm.xlu0 %85, %v76
    %v87 = vpop.permute.xlu0 %86
    %v90 = vlaneseq
    %v91 = vshrl.u32 %v90, 7
    %v92 = vsub.s32 0, %v91
    %v93 = vrot.slane %v77, %v92
    %v94 = vlaneseq
    %v95 = vshrl.u32 %v94, 7
    %v96 = vsub.s32 1, %v95
    %v97 = vrot.slane %v77, %v96
    %v100 = vmul.f32 %v82, %v93
    %v101 = vmul.f32 %v82, %v97
    %v102 = vmul.f32 %v87, %v93
    %v103 = vmul.f32 %v87, %v97
    %v105 = vlaneseq
    %v106 = vshrl.u32 %v105, 7
    %v107 = vsub.s32 0, %v106
    %v108 = vrot.slane %v78, %v107
    %v109 = vlaneseq
    %v110 = vshrl.u32 %v109, 7
    %v111 = vsub.s32 1, %v110
    %v112 = vrot.slane %v78, %v111
    %v115 = vadd.f32 %v100, %v108
    %v116 = vadd.f32 %v101, %v112
    %v117 = vadd.f32 %v102, %v108
    %v118 = vadd.f32 %v103, %v112
    %v119 = vcombine.high %v115, 0.0
    %v121 = vunpack.c.l.s4 1983009808
    %v122 = vunpack.c.0.s8 %v121
    %v123 = vlaneseq
    %v124 = vshrl.u32 %v123, 7
    %v125 = vsub.s32 %v122, %v124
    %v126 = vrot.slane %v115, %v125
    %v128 = vunpack.c.l.s4 1983009808
    %v129 = vunpack.c.0.s8 %v128
    %v130 = vlaneseq
    %v131 = vshrl.u32 %v130, 7
    %v132 = vsub.s32 %v129, %v131
    %v133 = vrot.slane %v119, %v132
    %v134 = vcombine.high %v117, 0.0
    %v136 = vunpack.c.l.s4 1983009808
    %v137 = vunpack.c.0.s8 %v136
    %v138 = vlaneseq
    %v139 = vshrl.u32 %v138, 7
    %v140 = vsub.s32 %v137, %v139
    %v141 = vrot.slane %v117, %v140
    %v143 = vunpack.c.l.s4 1983009808
    %v144 = vunpack.c.0.s8 %v143
    %v145 = vlaneseq
    %v146 = vshrl.u32 %v145, 7
    %v147 = vsub.s32 %v144, %v146
    %v148 = vrot.slane %v134, %v147
    %v149 = vcombine.low %v126, %v141
    %v150 = vcombine.high %v126, %v141
    %v152 = vunpack.c.l.s4 1934713408
    %v153 = vunpack.c.0.s8 %v152
    %v154 = vlaneseq
    %v155 = vshrl.u32 %v154, 7
    %v156 = vsub.s32 %v153, %v155
    %v157 = vrot.slane %v149, %v156
    %v159 = vunpack.c.l.s4 1934713408
    %v160 = vunpack.c.0.s8 %v159
    %v161 = vlaneseq
    %v162 = vshrl.u32 %v161, 7
    %v163 = vsub.s32 %v160, %v162
    %v164 = vrot.slane %v150, %v163
    %v165 = vcombine.low %v133, %v148
    %v166 = vcombine.high %v133, %v148
    %v168 = vunpack.c.l.s4 1934713408
    %v169 = vunpack.c.0.s8 %v168
    %v170 = vlaneseq
    %v171 = vshrl.u32 %v170, 7
    %v172 = vsub.s32 %v169, %v171
    %v173 = vrot.slane %v165, %v172
    %v175 = vunpack.c.l.s4 1934713408
    %v176 = vunpack.c.0.s8 %v175
    %v177 = vlaneseq
    %v178 = vshrl.u32 %v177, 7
    %v179 = vsub.s32 %v176, %v178
    %v180 = vrot.slane %v166, %v179
    %v181 = vcombine.high %v157, 0.0
    %v182 = vcombine.high %v164, 0.0
    %v183 = vcombine.high %v173, 0.0
    %v184 = vcombine.high %v180, 0.0
    %v185 = vcombine.high %v116, 0.0
    %v187 = vunpack.c.l.s4 1983009808
    %v188 = vunpack.c.0.s8 %v187
    %v189 = vlaneseq
    %v190 = vshrl.u32 %v189, 7
    %v191 = vsub.s32 %v188, %v190
    %v192 = vrot.slane %v116, %v191
    %v194 = vunpack.c.l.s4 1983009808
    %v195 = vunpack.c.0.s8 %v194
    %v196 = vlaneseq
    %v197 = vshrl.u32 %v196, 7
    %v198 = vsub.s32 %v195, %v197
    %v199 = vrot.slane %v185, %v198
    %v200 = vcombine.high %v118, 0.0
    %v202 = vunpack.c.l.s4 1983009808
    %v203 = vunpack.c.0.s8 %v202
    %v204 = vlaneseq
    %v205 = vshrl.u32 %v204, 7
    %v206 = vsub.s32 %v203, %v205
    %v207 = vrot.slane %v118, %v206
    %v209 = vunpack.c.l.s4 1983009808
    %v210 = vunpack.c.0.s8 %v209
    %v211 = vlaneseq
    %v212 = vshrl.u32 %v211, 7
    %v213 = vsub.s32 %v210, %v212
    %v214 = vrot.slane %v200, %v213
    %v215 = vcombine.low %v192, %v207
    %v216 = vcombine.high %v192, %v207
    %v218 = vunpack.c.l.s4 1934713408
    %v219 = vunpack.c.0.s8 %v218
    %v220 = vlaneseq
    %v221 = vshrl.u32 %v220, 7
    %v222 = vsub.s32 %v219, %v221
    %v223 = vrot.slane %v215, %v222
    %v225 = vunpack.c.l.s4 1934713408
    %v226 = vunpack.c.0.s8 %v225
    %v227 = vlaneseq
    %v228 = vshrl.u32 %v227, 7
    %v229 = vsub.s32 %v226, %v228
    %v230 = vrot.slane %v216, %v229
    %v231 = vcombine.low %v199, %v214
    %v232 = vcombine.high %v199, %v214
    %v234 = vunpack.c.l.s4 1934713408
    %v235 = vunpack.c.0.s8 %v234
    %v236 = vlaneseq
    %v237 = vshrl.u32 %v236, 7
    %v238 = vsub.s32 %v235, %v237
    %v239 = vrot.slane %v231, %v238
    %v241 = vunpack.c.l.s4 1934713408
    %v242 = vunpack.c.0.s8 %v241
    %v243 = vlaneseq
    %v244 = vshrl.u32 %v243, 7
    %v245 = vsub.s32 %v242, %v244
    %v246 = vrot.slane %v232, %v245
    %v247 = vcombine.high %v223, 0.0
    %v248 = vcombine.high %v230, 0.0
    %v249 = vcombine.high %v239, 0.0
    %v250 = vcombine.high %v246, 0.0
    %v251 = vld [vmem:[#allocation3] sm:$0xff]
    %v252 = vld [vmem:[#allocation3 + $0x8] sm:$0xff]
    %v253 = vld [vmem:[#allocation3 + $0x10] sm:$0xff]
    %v254 = vld [vmem:[#allocation3 + $0x18] sm:$0xff]
    %v255 = vld [vmem:[#allocation3 + $0x20] sm:$0xff]
    %v256 = vld [vmem:[#allocation3 + $0x28] sm:$0xff]
    %v257 = vld [vmem:[#allocation3 + $0x30] sm:$0xff]
    %v258 = vld [vmem:[#allocation3 + $0x38] sm:$0xff]
    %v259 = vld [vmem:[#allocation3 + $0x40] sm:$0xff]
    %v260 = vld [vmem:[#allocation3 + $0x48] sm:$0xff]
    %v261 = vld [vmem:[#allocation3 + $0x50] sm:$0xff]
    %v262 = vld [vmem:[#allocation3 + $0x58] sm:$0xff]
    %v263 = vld [vmem:[#allocation3 + $0x60] sm:$0xff]
    %v264 = vld [vmem:[#allocation3 + $0x68] sm:$0xff]
    %v265 = vld [vmem:[#allocation3 + $0x70] sm:$0xff]
    %v266 = vld [vmem:[#allocation3 + $0x78] sm:$0xff]
    %v267 = vld [vmem:[#allocation5] sm:$0xff]
    %v268 = vld [vmem:[#allocation5 + $0x8] sm:$0xff]
    %v269 = vld [vmem:[#allocation5 + $0x10] sm:$0xff]
    %v270 = vld [vmem:[#allocation5 + $0x18] sm:$0xff]
    %v271 = vld [vmem:[#allocation5 + $0x20] sm:$0xff]
    %v272 = vld [vmem:[#allocation5 + $0x28] sm:$0xff]
    %v273 = vld [vmem:[#allocation5 + $0x30] sm:$0xff]
    %v274 = vld [vmem:[#allocation5 + $0x38] sm:$0xff]
    %v275 = vld [vmem:[#allocation5 + $0x40] sm:$0xff]
    %v276 = vld [vmem:[#allocation5 + $0x48] sm:$0xff]
    %v277 = vld [vmem:[#allocation5 + $0x50] sm:$0xff]
    %v278 = vld [vmem:[#allocation5 + $0x58] sm:$0xff]
    %v279 = vld [vmem:[#allocation5 + $0x60] sm:$0xff]
    %v280 = vld [vmem:[#allocation5 + $0x68] sm:$0xff]
    %v281 = vld [vmem:[#allocation5 + $0x70] sm:$0xff]
    %v282 = vld [vmem:[#allocation5 + $0x78] sm:$0xff]
    %v283 = vld [vmem:[#allocation7] sm:$0xff]
    %v284 = vld [vmem:[#allocation7 + $0x8] sm:$0xff]
    %v285 = vld [vmem:[#allocation7 + $0x10] sm:$0xff]
    %v286 = vld [vmem:[#allocation7 + $0x18] sm:$0xff]
    %v287 = vld [vmem:[#allocation7 + $0x20] sm:$0xff]
    %v288 = vld [vmem:[#allocation7 + $0x28] sm:$0xff]
    %v289 = vld [vmem:[#allocation7 + $0x30] sm:$0xff]
    %v290 = vld [vmem:[#allocation7 + $0x38] sm:$0xff]
    %v291 = vld [vmem:[#allocation7 + $0x40] sm:$0xff]
    %v292 = vld [vmem:[#allocation7 + $0x48] sm:$0xff]
    %v293 = vld [vmem:[#allocation7 + $0x50] sm:$0xff]
    %v294 = vld [vmem:[#allocation7 + $0x58] sm:$0xff]
    %v295 = vld [vmem:[#allocation7 + $0x60] sm:$0xff]
    %v296 = vld [vmem:[#allocation7 + $0x68] sm:$0xff]
    %v297 = vld [vmem:[#allocation7 + $0x70] sm:$0xff]
    %v298 = vld [vmem:[#allocation7 + $0x78] sm:$0xff]
    %v299 = vld [vmem:[%s6] sm:$0x3]
    %v301 = vlaneseq
    %v302 = vshrl.u32 %v301, 7
    %v303 = vsub.s32 0, %v302
    %v304 = vrot.slane %v299, %v303
    %v305 = vlaneseq
    %v306 = vshrl.u32 %v305, 7
    %v307 = vsub.s32 1, %v306
    %v308 = vrot.slane %v299, %v307
    %v311 = vlaneseq
    %v312 = vand.u32 %v311, 127
    %v313 = vadd.s32 %v312, 128
    %vm314 = vcmp.lt.s32.totalorder %v312, 192
    %vm315 = vcmp.lt.s32.totalorder %v313, 192
    %v316 = vsel %vm314, 0.5, 1.0
    %v317 = vsel %vm315, 0.5, 1.0
    %v318 = vsel %vm314, 0.5, 0.0
    %v319 = vsel %vm315, 0.5, 0.0
    %vm320 = vcmask 523264
    %v322 = vsel %vm320, 0.0, 0
    %324 = vmatprep.subr.mxu0 %v252
    %325 = vmatpush1.msra.mxu0 %v251
    %326 = vmatprep.subr.mxu0 %v254
    %327 = vmatpush1.msra.mxu0 %v253
    %328 = vmatprep.subr.mxu0 %v256
    %329 = vmatpush1.msra.mxu0 %v255
    %330 = vmatprep.subr.mxu0 %v258
    %331 = vmatpush1.msra.mxu0 %v257
    %332 = vmatprep.subr.mxu0 %v260
    %333 = vmatpush1.msra.mxu0 %v259
    %334 = vmatprep.subr.mxu0 %v262
    %335 = vmatpush1.msra.mxu0 %v261
    %336 = vmatprep.subr.mxu0 %v264
    %337 = vmatpush1.msra.mxu0 %v263
    %338 = vmatprep.subr.mxu0 %v266
    %339 = vmatpush1.msra.mxu0 %v265
    %340 = vmatprep.subr.mxu0 0.0
    %341 = vmatpush1.msra.mxu0 0.0
    %342 = vmatprep.subr.mxu0 0.0
    %343 = vmatpush1.msra.mxu0 0.0
    %344 = vmatprep.subr.mxu0 0.0
    %345 = vmatpush1.msra.mxu0 0.0
    %346 = vmatprep.subr.mxu0 0.0
    %347 = vmatpush1.msra.mxu0 0.0
    %348 = vmatprep.subr.mxu0 0.0
    %349 = vmatpush1.msra.mxu0 0.0
    %350 = vmatprep.subr.mxu0 0.0
    %351 = vmatpush1.msra.mxu0 0.0
    %352 = vmatprep.subr.mxu0 0.0
    %353 = vmatpush1.msra.mxu0 0.0
    %354 = vmatprep.subr.mxu0 0.0
    %355 = vmatpush1.msra.mxu0 0.0
    %356 = vmatprep.subr.mxu0 0.0
    %357 = vmatpush1.msra.mxu0 0.0
    %358 = vmatprep.subr.mxu0 0.0
    %359 = vmatpush1.msra.mxu0 0.0
    %360 = vmatprep.subr.mxu0 0.0
    %361 = vmatpush1.msra.mxu0 0.0
    %362 = vmatprep.subr.mxu0 0.0
    %363 = vmatpush1.msra.mxu0 0.0
    %364 = vmatprep.subr.mxu0 0.0
    %365 = vmatpush1.msra.mxu0 0.0
    %366 = vmatprep.subr.mxu0 0.0
    %367 = vmatpush1.msra.mxu0 0.0
    %368 = vmatprep.subr.mxu0 0.0
    %369 = vmatpush1.msra.mxu0 0.0
    %370 = vmatprep.subr.mxu0 0.0
    %371 = vmatpush1.msra.mxu0 0.0
    %372 = vmatprep.subr.mxu0 0.0
    %373 = vmatpush1.msra.mxu0 0.0
    %374 = vmatprep.subr.mxu0 0.0
    %375 = vmatpush1.msra.mxu0 0.0
    %376 = vmatprep.subr.mxu0 0.0
    %377 = vmatpush1.msra.mxu0 0.0
    %378 = vmatprep.subr.mxu0 0.0
    %379 = vmatpush1.msra.mxu0 0.0
    %380 = vmatprep.subr.mxu0 0.0
    %381 = vmatpush1.msra.mxu0 0.0
    %382 = vmatprep.subr.mxu0 0.0
    %383 = vmatpush1.msra.mxu0 0.0
    %384 = vmatprep.subr.mxu0 0.0
    %385 = vmatpush1.msra.mxu0 0.0
    %386 = vmatprep.subr.mxu0 0.0
    %387 = vmatpush1.msra.mxu0 0.0
    %388 = vmatprep.mubr.f32.mxu0 0.0
    %389 = vmatmul.mubr.f32.gmra.mrb[0].mxu0 %v322
    %v390 = vpop.f32.mrb[0].mxu0
    %v391 = vadd.f32 0.0, %v390
    %v392 = vpop.f32.mrb[0].mxu0
    %v393 = vadd.f32 0.0, %v392
    %394 = vdwg.mxu0
    %v395 = vadd.f32 %v157, %v391
    %v396 = vadd.f32 %v223, %v393
    %v397 = vmul.f32 %v395, %v316
    %v398 = vmul.f32 %v396, %v317
    %v399 = vtanh.pop %v397
    %v400 = vtanh.pop %v398
    %v401 = vmul.f32 %v399, %v316
    %v402 = vmul.f32 %v400, %v317
    %v403 = vadd.f32 %v401, %v318
    %v404 = vadd.f32 %v402, %v319
    %v405 = vmul.f32 %v403, 0.0
    %407 = vrot.lane.b32.xlu0 %v404, 64
    %v408 = vpop.permute.xlu0 %407
    %v410 = vmul.f32 %v403, %v408
    %412 = vrot.lane.b32.xlu0 %v410, 64
    %v413 = vpop.permute.xlu0 %412
    %v415 = vadd.f32 %v405, %v413
    %v416 = vtanh.pop %v415
    %418 = vrot.lane.b32.xlu0 %v416, 64
    %v419 = vpop.permute.xlu0 %418
    %v421 = vmul.f32 %v404, %v419
    %v423 = vsel %vm320, %v421, 0
    %425 = vmatprep.subr.mxu0 %v268
    %426 = vmatpush1.msra.mxu0 %v267
    %427 = vmatprep.subr.mxu0 %v270
    %428 = vmatpush1.msra.mxu0 %v269
    %429 = vmatprep.subr.mxu0 %v272
    %430 = vmatpush1.msra.mxu0 %v271
    %431 = vmatprep.subr.mxu0 %v274
    %432 = vmatpush1.msra.mxu0 %v273
    %433 = vmatprep.subr.mxu0 %v276
    %434 = vmatpush1.msra.mxu0 %v275
    %435 = vmatprep.subr.mxu0 %v278
    %436 = vmatpush1.msra.mxu0 %v277
    %437 = vmatprep.subr.mxu0 %v280
    %438 = vmatpush1.msra.mxu0 %v279
    %439 = vmatprep.subr.mxu0 %v282
    %440 = vmatpush1.msra.mxu0 %v281
    %441 = vmatprep.subr.mxu0 0.0
    %442 = vmatpush1.msra.mxu0 0.0
    %443 = vmatprep.subr.mxu0 0.0
    %444 = vmatpush1.msra.mxu0 0.0
    %445 = vmatprep.subr.mxu0 0.0
    %446 = vmatpush1.msra.mxu0 0.0
    %447 = vmatprep.subr.mxu0 0.0
    %448 = vmatpush1.msra.mxu0 0.0
    %449 = vmatprep.subr.mxu0 0.0
    %450 = vmatpush1.msra.mxu0 0.0
    %451 = vmatprep.subr.mxu0 0.0
    %452 = vmatpush1.msra.mxu0 0.0
    %453 = vmatprep.subr.mxu0 0.0
    %454 = vmatpush1.msra.mxu0 0.0
    %455 = vmatprep.subr.mxu0 0.0
    %456 = vmatpush1.msra.mxu0 0.0
    %457 = vmatprep.subr.mxu0 0.0
    %458 = vmatpush1.msra.mxu0 0.0
    %459 = vmatprep.subr.mxu0 0.0
    %460 = vmatpush1.msra.mxu0 0.0
    %461 = vmatprep.subr.mxu0 0.0
    %462 = vmatpush1.msra.mxu0 0.0
    %463 = vmatprep.subr.mxu0 0.0
    %464 = vmatpush1.msra.mxu0 0.0
    %465 = vmatprep.subr.mxu0 0.0
    %466 = vmatpush1.msra.mxu0 0.0
    %467 = vmatprep.subr.mxu0 0.0
    %468 = vmatpush1.msra.mxu0 0.0
    %469 = vmatprep.subr.mxu0 0.0
    %470 = vmatpush1.msra.mxu0 0.0
    %471 = vmatprep.subr.mxu0 0.0
    %472 = vmatpush1.msra.mxu0 0.0
    %473 = vmatprep.subr.mxu0 0.0
    %474 = vmatpush1.msra.mxu0 0.0
    %475 = vmatprep.subr.mxu0 0.0
    %476 = vmatpush1.msra.mxu0 0.0
    %477 = vmatprep.subr.mxu0 0.0
    %478 = vmatpush1.msra.mxu0 0.0
    %479 = vmatprep.subr.mxu0 0.0
    %480 = vmatpush1.msra.mxu0 0.0
    %481 = vmatprep.subr.mxu0 0.0
    %482 = vmatpush1.msra.mxu0 0.0
    %483 = vmatprep.subr.mxu0 0.0
    %484 = vmatpush1.msra.mxu0 0.0
    %485 = vmatprep.subr.mxu0 0.0
    %486 = vmatpush1.msra.mxu0 0.0
    %487 = vmatprep.subr.mxu0 0.0
    %488 = vmatpush1.msra.mxu0 0.0
    %489 = vmatprep.mubr.f32.mxu0 0.0
    %490 = vmatmul.mubr.f32.gmra.mrb[0].mxu0 %v423
    %v491 = vpop.f32.mrb[0].mxu0
    %v492 = vadd.f32 %v304, %v491
    %v493 = vpop.f32.mrb[0].mxu0
    %v494 = vadd.f32 %v308, %v493
    %495 = vdwg.mxu0
    %496 = vmatprep.subr.mxu0 %v252
    %497 = vmatpush1.msra.mxu0 %v251
    %498 = vmatprep.subr.mxu0 %v254
    %499 = vmatpush1.msra.mxu0 %v253
    %500 = vmatprep.subr.mxu0 %v256
    %501 = vmatpush1.msra.mxu0 %v255
    %502 = vmatprep.subr.mxu0 %v258
    %503 = vmatpush1.msra.mxu0 %v257
    %504 = vmatprep.subr.mxu0 %v260
    %505 = vmatpush1.msra.mxu0 %v259
    %506 = vmatprep.subr.mxu0 %v262
    %507 = vmatpush1.msra.mxu0 %v261
    %508 = vmatprep.subr.mxu0 %v264
    %509 = vmatpush1.msra.mxu0 %v263
    %510 = vmatprep.subr.mxu0 %v266
    %511 = vmatpush1.msra.mxu0 %v265
    %512 = vmatprep.subr.mxu0 0.0
    %513 = vmatpush1.msra.mxu0 0.0
    %514 = vmatprep.subr.mxu0 0.0
    %515 = vmatpush1.msra.mxu0 0.0
    %516 = vmatprep.subr.mxu0 0.0
    %517 = vmatpush1.msra.mxu0 0.0
    %518 = vmatprep.subr.mxu0 0.0
    %519 = vmatpush1.msra.mxu0 0.0
    %520 = vmatprep.subr.mxu0 0.0
    %521 = vmatpush1.msra.mxu0 0.0
    %522 = vmatprep.subr.mxu0 0.0
    %523 = vmatpush1.msra.mxu0 0.0
    %524 = vmatprep.subr.mxu0 0.0
    %525 = vmatpush1.msra.mxu0 0.0
    %526 = vmatprep.subr.mxu0 0.0
    %527 = vmatpush1.msra.mxu0 0.0
    %528 = vmatprep.subr.mxu0 0.0
    %529 = vmatpush1.msra.mxu0 0.0
    %530 = vmatprep.subr.mxu0 0.0
    %531 = vmatpush1.msra.mxu0 0.0
    %532 = vmatprep.subr.mxu0 0.0
    %533 = vmatpush1.msra.mxu0 0.0
    %534 = vmatprep.subr.mxu0 0.0
    %535 = vmatpush1.msra.mxu0 0.0
    %536 = vmatprep.subr.mxu0 0.0
    %537 = vmatpush1.msra.mxu0 0.0
    %538 = vmatprep.subr.mxu0 0.0
    %539 = vmatpush1.msra.mxu0 0.0
    %540 = vmatprep.subr.mxu0 0.0
    %541 = vmatpush1.msra.mxu0 0.0
    %542 = vmatprep.subr.mxu0 0.0
    %543 = vmatpush1.msra.mxu0 0.0
    %544 = vmatprep.subr.mxu0 0.0
    %545 = vmatpush1.msra.mxu0 0.0
    %546 = vmatprep.subr.mxu0 0.0
    %547 = vmatpush1.msra.mxu0 0.0
    %548 = vmatprep.subr.mxu0 0.0
    %549 = vmatpush1.msra.mxu0 0.0
    %550 = vmatprep.subr.mxu0 0.0
    %551 = vmatpush1.msra.mxu0 0.0
    %552 = vmatprep.subr.mxu0 0.0
    %553 = vmatpush1.msra.mxu0 0.0
    %554 = vmatprep.subr.mxu0 0.0
    %555 = vmatpush1.msra.mxu0 0.0
    %556 = vmatprep.subr.mxu0 0.0
    %557 = vmatpush1.msra.mxu0 0.0
    %558 = vmatprep.subr.mxu0 0.0
    %559 = vmatpush1.msra.mxu0 0.0
    %560 = vmatprep.mubr.f32.mxu0 0.0
    %561 = vmatmul.mubr.f32.gmra.mrb[0].mxu0 %v423
    %v562 = vpop.f32.mrb[0].mxu0
    %v563 = vadd.f32 0.0, %v562
    %v564 = vpop.f32.mrb[0].mxu0
    %v565 = vadd.f32 0.0, %v564
    %566 = vdwg.mxu0
    %v567 = vadd.f32 %v181, %v563
    %v568 = vadd.f32 %v247, %v565
    %v569 = vmul.f32 %v567, %v316
    %v570 = vmul.f32 %v568, %v317
    %v571 = vtanh.pop %v569
    %v572 = vtanh.pop %v570
    %v573 = vmul.f32 %v571, %v316
    %v574 = vmul.f32 %v572, %v317
    %v575 = vadd.f32 %v573, %v318
    %v576 = vadd.f32 %v574, %v319
    %v577 = vmul.f32 %v575, %v415
    %579 = vrot.lane.b32.xlu0 %v576, 64
    %v580 = vpop.permute.xlu0 %579
    %v582 = vmul.f32 %v575, %v580
    %584 = vrot.lane.b32.xlu0 %v582, 64
    %v585 = vpop.permute.xlu0 %584
    %v587 = vadd.f32 %v577, %v585
    %v588 = vtanh.pop %v587
    %590 = vrot.lane.b32.xlu0 %v588, 64
    %v591 = vpop.permute.xlu0 %590
    %v593 = vmul.f32 %v576, %v591
    %v595 = vsel %vm320, %v593, 0
    %597 = vmatprep.subr.mxu0 %v268
    %598 = vmatpush1.msra.mxu0 %v267
    %599 = vmatprep.subr.mxu0 %v270
    %600 = vmatpush1.msra.mxu0 %v269
    %601 = vmatprep.subr.mxu0 %v272
    %602 = vmatpush1.msra.mxu0 %v271
    %603 = vmatprep.subr.mxu0 %v274
    %604 = vmatpush1.msra.mxu0 %v273
    %605 = vmatprep.subr.mxu0 %v276
    %606 = vmatpush1.msra.mxu0 %v275
    %607 = vmatprep.subr.mxu0 %v278
    %608 = vmatpush1.msra.mxu0 %v277
    %609 = vmatprep.subr.mxu0 %v280
    %610 = vmatpush1.msra.mxu0 %v279
    %611 = vmatprep.subr.mxu0 %v282
    %612 = vmatpush1.msra.mxu0 %v281
    %613 = vmatprep.subr.mxu0 0.0
    %614 = vmatpush1.msra.mxu0 0.0
    %615 = vmatprep.subr.mxu0 0.0
    %616 = vmatpush1.msra.mxu0 0.0
    %617 = vmatprep.subr.mxu0 0.0
    %618 = vmatpush1.msra.mxu0 0.0
    %619 = vmatprep.subr.mxu0 0.0
    %620 = vmatpush1.msra.mxu0 0.0
    %621 = vmatprep.subr.mxu0 0.0
    %622 = vmatpush1.msra.mxu0 0.0
    %623 = vmatprep.subr.mxu0 0.0
    %624 = vmatpush1.msra.mxu0 0.0
    %625 = vmatprep.subr.mxu0 0.0
    %626 = vmatpush1.msra.mxu0 0.0
    %627 = vmatprep.subr.mxu0 0.0
    %628 = vmatpush1.msra.mxu0 0.0
    %629 = vmatprep.subr.mxu0 0.0
    %630 = vmatpush1.msra.mxu0 0.0
    %631 = vmatprep.subr.mxu0 0.0
    %632 = vmatpush1.msra.mxu0 0.0
    %633 = vmatprep.subr.mxu0 0.0
    %634 = vmatpush1.msra.mxu0 0.0
    %635 = vmatprep.subr.mxu0 0.0
    %636 = vmatpush1.msra.mxu0 0.0
    %637 = vmatprep.subr.mxu0 0.0
    %638 = vmatpush1.msra.mxu0 0.0
    %639 = vmatprep.subr.mxu0 0.0
    %640 = vmatpush1.msra.mxu0 0.0
    %641 = vmatprep.subr.mxu0 0.0
    %642 = vmatpush1.msra.mxu0 0.0
    %643 = vmatprep.subr.mxu0 0.0
    %644 = vmatpush1.msra.mxu0 0.0
    %645 = vmatprep.subr.mxu0 0.0
    %646 = vmatpush1.msra.mxu0 0.0
    %647 = vmatprep.subr.mxu0 0.0
    %648 = vmatpush1.msra.mxu0 0.0
    %649 = vmatprep.subr.mxu0 0.0
    %650 = vmatpush1.msra.mxu0 0.0
    %651 = vmatprep.subr.mxu0 0.0
    %652 = vmatpush1.msra.mxu0 0.0
    %653 = vmatprep.subr.mxu0 0.0
    %654 = vmatpush1.msra.mxu0 0.0
    %655 = vmatprep.subr.mxu0 0.0
    %656 = vmatpush1.msra.mxu0 0.0
    %657 = vmatprep.subr.mxu0 0.0
    %658 = vmatpush1.msra.mxu0 0.0
    %659 = vmatprep.subr.mxu0 0.0
    %660 = vmatpush1.msra.mxu0 0.0
    %661 = vmatprep.mubr.f32.mxu0 0.0
    %662 = vmatmul.mubr.f32.gmra.mrb[0].mxu0 %v595
    %v663 = vpop.f32.mrb[0].mxu0
    %v664 = vadd.f32 %v304, %v663
    %v665 = vpop.f32.mrb[0].mxu0
    %v666 = vadd.f32 %v308, %v665
    %667 = vdwg.mxu0
    %668 = vmatprep.subr.mxu0 %v252
    %669 = vmatpush1.msra.mxu0 %v251
    %670 = vmatprep.subr.mxu0 %v254
    %671 = vmatpush1.msra.mxu0 %v253
    %672 = vmatprep.subr.mxu0 %v256
    %673 = vmatpush1.msra.mxu0 %v255
    %674 = vmatprep.subr.mxu0 %v258
    %675 = vmatpush1.msra.mxu0 %v257
    %676 = vmatprep.subr.mxu0 %v260
    %677 = vmatpush1.msra.mxu0 %v259
    %678 = vmatprep.subr.mxu0 %v262
    %679 = vmatpush1.msra.mxu0 %v261
    %680 = vmatprep.subr.mxu0 %v264
    %681 = vmatpush1.msra.mxu0 %v263
    %682 = vmatprep.subr.mxu0 %v266
    %683 = vmatpush1.msra.mxu0 %v265
    %684 = vmatprep.subr.mxu0 0.0
    %685 = vmatpush1.msra.mxu0 0.0
    %686 = vmatprep.subr.mxu0 0.0
    %687 = vmatpush1.msra.mxu0 0.0
    %688 = vmatprep.subr.mxu0 0.0
    %689 = vmatpush1.msra.mxu0 0.0
    %690 = vmatprep.subr.mxu0 0.0
    %691 = vmatpush1.msra.mxu0 0.0
    %692 = vmatprep.subr.mxu0 0.0
    %693 = vmatpush1.msra.mxu0 0.0
    %694 = vmatprep.subr.mxu0 0.0
    %695 = vmatpush1.msra.mxu0 0.0
    %696 = vmatprep.subr.mxu0 0.0
    %697 = vmatpush1.msra.mxu0 0.0
    %698 = vmatprep.subr.mxu0 0.0
    %699 = vmatpush1.msra.mxu0 0.0
    %700 = vmatprep.subr.mxu0 0.0
    %701 = vmatpush1.msra.mxu0 0.0
    %702 = vmatprep.subr.mxu0 0.0
    %703 = vmatpush1.msra.mxu0 0.0
    %704 = vmatprep.subr.mxu0 0.0
    %705 = vmatpush1.msra.mxu0 0.0
    %706 = vmatprep.subr.mxu0 0.0
    %707 = vmatpush1.msra.mxu0 0.0
    %708 = vmatprep.subr.mxu0 0.0
    %709 = vmatpush1.msra.mxu0 0.0
    %710 = vmatprep.subr.mxu0 0.0
    %711 = vmatpush1.msra.mxu0 0.0
    %712 = vmatprep.subr.mxu0 0.0
    %713 = vmatpush1.msra.mxu0 0.0
    %714 = vmatprep.subr.mxu0 0.0
    %715 = vmatpush1.msra.mxu0 0.0
    %716 = vmatprep.subr.mxu0 0.0
    %717 = vmatpush1.msra.mxu0 0.0
    %718 = vmatprep.subr.mxu0 0.0
    %719 = vmatpush1.msra.mxu0 0.0
    %720 = vmatprep.subr.mxu0 0.0
    %721 = vmatpush1.msra.mxu0 0.0
    %722 = vmatprep.subr.mxu0 0.0
    %723 = vmatpush1.msra.mxu0 0.0
    %724 = vmatprep.subr.mxu0 0.0
    %725 = vmatpush1.msra.mxu0 0.0
    %726 = vmatprep.subr.mxu0 0.0
    %727 = vmatpush1.msra.mxu0 0.0
    %728 = vmatprep.subr.mxu0 0.0
    %729 = vmatpush1.msra.mxu0 0.0
    %730 = vmatprep.subr.mxu0 0.0
    %731 = vmatpush1.msra.mxu0 0.0
    %732 = vmatprep.mubr.f32.mxu0 0.0
    %733 = vmatmul.mubr.f32.gmra.mrb[0].mxu0 %v595
    %v734 = vpop.f32.mrb[0].mxu0
    %v735 = vadd.f32 0.0, %v734
    %v736 = vpop.f32.mrb[0].mxu0
    %v737 = vadd.f32 0.0, %v736
    %738 = vdwg.mxu0
    %v739 = vadd.f32 %v164, %v735
    %v740 = vadd.f32 %v230, %v737
    %v741 = vmul.f32 %v739, %v316
    %v742 = vmul.f32 %v740, %v317
    %v743 = vtanh.pop %v741
    %v744 = vtanh.pop %v742
    %v745 = vmul.f32 %v743, %v316
    %v746 = vmul.f32 %v744, %v317
    %v747 = vadd.f32 %v745, %v318
    %v748 = vadd.f32 %v746, %v319
    %v749 = vmul.f32 %v747, %v587
    %751 = vrot.lane.b32.xlu0 %v748, 64
    %v752 = vpop.permute.xlu0 %751
    %v754 = vmul.f32 %v747, %v752
    %756 = vrot.lane.b32.xlu0 %v754, 64
    %v757 = vpop.permute.xlu0 %756
    %v759 = vadd.f32 %v749, %v757
    %v760 = vtanh.pop %v759
    %762 = vrot.lane.b32.xlu0 %v760, 64
    %v763 = vpop.permute.xlu0 %762
    %v765 = vmul.f32 %v748, %v763
    %v767 = vsel %vm320, %v765, 0
    %769 = vmatprep.subr.mxu0 %v268
    %770 = vmatpush1.msra.mxu0 %v267
    %771 = vmatprep.subr.mxu0 %v270
    %772 = vmatpush1.msra.mxu0 %v269
    %773 = vmatprep.subr.mxu0 %v272
    %774 = vmatpush1.msra.mxu0 %v271
    %775 = vmatprep.subr.mxu0 %v274
    %776 = vmatpush1.msra.mxu0 %v273
    %777 = vmatprep.subr.mxu0 %v276
    %778 = vmatpush1.msra.mxu0 %v275
    %779 = vmatprep.subr.mxu0 %v278
    %780 = vmatpush1.msra.mxu0 %v277
    %781 = vmatprep.subr.mxu0 %v280
    %782 = vmatpush1.msra.mxu0 %v279
    %783 = vmatprep.subr.mxu0 %v282
    %784 = vmatpush1.msra.mxu0 %v281
    %785 = vmatprep.subr.mxu0 0.0
    %786 = vmatpush1.msra.mxu0 0.0
    %787 = vmatprep.subr.mxu0 0.0
    %788 = vmatpush1.msra.mxu0 0.0
    %789 = vmatprep.subr.mxu0 0.0
    %790 = vmatpush1.msra.mxu0 0.0
    %791 = vmatprep.subr.mxu0 0.0
    %792 = vmatpush1.msra.mxu0 0.0
    %793 = vmatprep.subr.mxu0 0.0
    %794 = vmatpush1.msra.mxu0 0.0
    %795 = vmatprep.subr.mxu0 0.0
    %796 = vmatpush1.msra.mxu0 0.0
    %797 = vmatprep.subr.mxu0 0.0
    %798 = vmatpush1.msra.mxu0 0.0
    %799 = vmatprep.subr.mxu0 0.0
    %800 = vmatpush1.msra.mxu0 0.0
    %801 = vmatprep.subr.mxu0 0.0
    %802 = vmatpush1.msra.mxu0 0.0
    %803 = vmatprep.subr.mxu0 0.0
    %804 = vmatpush1.msra.mxu0 0.0
    %805 = vmatprep.subr.mxu0 0.0
    %806 = vmatpush1.msra.mxu0 0.0
    %807 = vmatprep.subr.mxu0 0.0
    %808 = vmatpush1.msra.mxu0 0.0
    %809 = vmatprep.subr.mxu0 0.0
    %810 = vmatpush1.msra.mxu0 0.0
    %811 = vmatprep.subr.mxu0 0.0
    %812 = vmatpush1.msra.mxu0 0.0
    %813 = vmatprep.subr.mxu0 0.0
    %814 = vmatpush1.msra.mxu0 0.0
    %815 = vmatprep.subr.mxu0 0.0
    %816 = vmatpush1.msra.mxu0 0.0
    %817 = vmatprep.subr.mxu0 0.0
    %818 = vmatpush1.msra.mxu0 0.0
    %819 = vmatprep.subr.mxu0 0.0
    %820 = vmatpush1.msra.mxu0 0.0
    %821 = vmatprep.subr.mxu0 0.0
    %822 = vmatpush1.msra.mxu0 0.0
    %823 = vmatprep.subr.mxu0 0.0
    %824 = vmatpush1.msra.mxu0 0.0
    %825 = vmatprep.subr.mxu0 0.0
    %826 = vmatpush1.msra.mxu0 0.0
    %827 = vmatprep.subr.mxu0 0.0
    %828 = vmatpush1.msra.mxu0 0.0
    %829 = vmatprep.subr.mxu0 0.0
    %830 = vmatpush1.msra.mxu0 0.0
    %831 = vmatprep.subr.mxu0 0.0
    %832 = vmatpush1.msra.mxu0 0.0
    %833 = vmatprep.mubr.f32.mxu0 0.0
    %834 = vmatmul.mubr.f32.gmra.mrb[0].mxu0 %v767
    %v835 = vpop.f32.mrb[0].mxu0
    %v836 = vadd.f32 %v304, %v835
    %v837 = vpop.f32.mrb[0].mxu0
    %v838 = vadd.f32 %v308, %v837
    %839 = vdwg.mxu0
    %840 = vmatprep.subr.mxu0 %v252
    %841 = vmatpush1.msra.mxu0 %v251
    %842 = vmatprep.subr.mxu0 %v254
    %843 = vmatpush1.msra.mxu0 %v253
    %844 = vmatprep.subr.mxu0 %v256
    %845 = vmatpush1.msra.mxu0 %v255
    %846 = vmatprep.subr.mxu0 %v258
    %847 = vmatpush1.msra.mxu0 %v257
    %848 = vmatprep.subr.mxu0 %v260
    %849 = vmatpush1.msra.mxu0 %v259
    %850 = vmatprep.subr.mxu0 %v262
    %851 = vmatpush1.msra.mxu0 %v261
    %852 = vmatprep.subr.mxu0 %v264
    %853 = vmatpush1.msra.mxu0 %v263
    %854 = vmatprep.subr.mxu0 %v266
    %855 = vmatpush1.msra.mxu0 %v265
    %856 = vmatprep.subr.mxu0 0.0
    %857 = vmatpush1.msra.mxu0 0.0
    %858 = vmatprep.subr.mxu0 0.0
    %859 = vmatpush1.msra.mxu0 0.0
    %860 = vmatprep.subr.mxu0 0.0
    %861 = vmatpush1.msra.mxu0 0.0
    %862 = vmatprep.subr.mxu0 0.0
    %863 = vmatpush1.msra.mxu0 0.0
    %864 = vmatprep.subr.mxu0 0.0
    %865 = vmatpush1.msra.mxu0 0.0
    %866 = vmatprep.subr.mxu0 0.0
    %867 = vmatpush1.msra.mxu0 0.0
    %868 = vmatprep.subr.mxu0 0.0
    %869 = vmatpush1.msra.mxu0 0.0
    %870 = vmatprep.subr.mxu0 0.0
    %871 = vmatpush1.msra.mxu0 0.0
    %872 = vmatprep.subr.mxu0 0.0
    %873 = vmatpush1.msra.mxu0 0.0
    %874 = vmatprep.subr.mxu0 0.0
    %875 = vmatpush1.msra.mxu0 0.0
    %876 = vmatprep.subr.mxu0 0.0
    %877 = vmatpush1.msra.mxu0 0.0
    %878 = vmatprep.subr.mxu0 0.0
    %879 = vmatpush1.msra.mxu0 0.0
    %880 = vmatprep.subr.mxu0 0.0
    %881 = vmatpush1.msra.mxu0 0.0
    %882 = vmatprep.subr.mxu0 0.0
    %883 = vmatpush1.msra.mxu0 0.0
    %884 = vmatprep.subr.mxu0 0.0
    %885 = vmatpush1.msra.mxu0 0.0
    %886 = vmatprep.subr.mxu0 0.0
    %887 = vmatpush1.msra.mxu0 0.0
    %888 = vmatprep.subr.mxu0 0.0
    %889 = vmatpush1.msra.mxu0 0.0
    %890 = vmatprep.subr.mxu0 0.0
    %891 = vmatpush1.msra.mxu0 0.0
    %892 = vmatprep.subr.mxu0 0.0
    %893 = vmatpush1.msra.mxu0 0.0
    %894 = vmatprep.subr.mxu0 0.0
    %895 = vmatpush1.msra.mxu0 0.0
    %896 = vmatprep.subr.mxu0 0.0
    %897 = vmatpush1.msra.mxu0 0.0
    %898 = vmatprep.subr.mxu0 0.0
    %899 = vmatpush1.msra.mxu0 0.0
    %900 = vmatprep.subr.mxu0 0.0
    %901 = vmatpush1.msra.mxu0 0.0
    %902 = vmatprep.subr.mxu0 0.0
    %903 = vmatpush1.msra.mxu0 0.0
    %904 = vmatprep.mubr.f32.mxu0 0.0
    %905 = vmatmul.mubr.f32.gmra.mrb[0].mxu0 %v767
    %v906 = vpop.f32.mrb[0].mxu0
    %v907 = vadd.f32 0.0, %v906
    %v908 = vpop.f32.mrb[0].mxu0
    %v909 = vadd.f32 0.0, %v908
    %910 = vdwg.mxu0
    %v911 = vadd.f32 %v182, %v907
    %v912 = vadd.f32 %v248, %v909
    %v913 = vmul.f32 %v911, %v316
    %v914 = vmul.f32 %v912, %v317
    %v915 = vtanh.pop %v913
    %v916 = vtanh.pop %v914
    %v917 = vmul.f32 %v915, %v316
    %v918 = vmul.f32 %v916, %v317
    %v919 = vadd.f32 %v917, %v318
    %v920 = vadd.f32 %v918, %v319
    %v921 = vmul.f32 %v919, %v759
    %923 = vrot.lane.b32.xlu0 %v920, 64
    %v924 = vpop.permute.xlu0 %923
    %v926 = vmul.f32 %v919, %v924
    %928 = vrot.lane.b32.xlu0 %v926, 64
    %v929 = vpop.permute.xlu0 %928
    %v931 = vadd.f32 %v921, %v929
    %v932 = vtanh.pop %v931
    %934 = vrot.lane.b32.xlu0 %v932, 64
    %v935 = vpop.permute.xlu0 %934
    %v937 = vmul.f32 %v920, %v935
    %v939 = vsel %vm320, %v937, 0
    %941 = vmatprep.subr.mxu0 %v268
    %942 = vmatpush1.msra.mxu0 %v267
    %943 = vmatprep.subr.mxu0 %v270
    %944 = vmatpush1.msra.mxu0 %v269
    %945 = vmatprep.subr.mxu0 %v272
    %946 = vmatpush1.msra.mxu0 %v271
    %947 = vmatprep.subr.mxu0 %v274
    %948 = vmatpush1.msra.mxu0 %v273
    %949 = vmatprep.subr.mxu0 %v276
    %950 = vmatpush1.msra.mxu0 %v275
    %951 = vmatprep.subr.mxu0 %v278
    %952 = vmatpush1.msra.mxu0 %v277
    %953 = vmatprep.subr.mxu0 %v280
    %954 = vmatpush1.msra.mxu0 %v279
    %955 = vmatprep.subr.mxu0 %v282
    %956 = vmatpush1.msra.mxu0 %v281
    %957 = vmatprep.subr.mxu0 0.0
    %958 = vmatpush1.msra.mxu0 0.0
    %959 = vmatprep.subr.mxu0 0.0
    %960 = vmatpush1.msra.mxu0 0.0
    %961 = vmatprep.subr.mxu0 0.0
    %962 = vmatpush1.msra.mxu0 0.0
    %963 = vmatprep.subr.mxu0 0.0
    %964 = vmatpush1.msra.mxu0 0.0
    %965 = vmatprep.subr.mxu0 0.0
    %966 = vmatpush1.msra.mxu0 0.0
    %967 = vmatprep.subr.mxu0 0.0
    %968 = vmatpush1.msra.mxu0 0.0
    %969 = vmatprep.subr.mxu0 0.0
    %970 = vmatpush1.msra.mxu0 0.0
    %971 = vmatprep.subr.mxu0 0.0
    %972 = vmatpush1.msra.mxu0 0.0
    %973 = vmatprep.subr.mxu0 0.0
    %974 = vmatpush1.msra.mxu0 0.0
    %975 = vmatprep.subr.mxu0 0.0
    %976 = vmatpush1.msra.mxu0 0.0
    %977 = vmatprep.subr.mxu0 0.0
    %978 = vmatpush1.msra.mxu0 0.0
    %979 = vmatprep.subr.mxu0 0.0
    %980 = vmatpush1.msra.mxu0 0.0
    %981 = vmatprep.subr.mxu0 0.0
    %982 = vmatpush1.msra.mxu0 0.0
    %983 = vmatprep.subr.mxu0 0.0
    %984 = vmatpush1.msra.mxu0 0.0
    %985 = vmatprep.subr.mxu0 0.0
    %986 = vmatpush1.msra.mxu0 0.0
    %987 = vmatprep.subr.mxu0 0.0
    %988 = vmatpush1.msra.mxu0 0.0
    %989 = vmatprep.subr.mxu0 0.0
    %990 = vmatpush1.msra.mxu0 0.0
    %991 = vmatprep.subr.mxu0 0.0
    %992 = vmatpush1.msra.mxu0 0.0
    %993 = vmatprep.subr.mxu0 0.0
    %994 = vmatpush1.msra.mxu0 0.0
    %995 = vmatprep.subr.mxu0 0.0
    %996 = vmatpush1.msra.mxu0 0.0
    %997 = vmatprep.subr.mxu0 0.0
    %998 = vmatpush1.msra.mxu0 0.0
    %999 = vmatprep.subr.mxu0 0.0
    %1000 = vmatpush1.msra.mxu0 0.0
    %1001 = vmatprep.subr.mxu0 0.0
    %1002 = vmatpush1.msra.mxu0 0.0
    %1003 = vmatprep.subr.mxu0 0.0
    %1004 = vmatpush1.msra.mxu0 0.0
    %1005 = vmatprep.mubr.f32.mxu0 0.0
    %1006 = vmatmul.mubr.f32.gmra.mrb[0].mxu0 %v939
    %v1007 = vpop.f32.mrb[0].mxu0
    %v1008 = vadd.f32 %v304, %v1007
    %v1009 = vpop.f32.mrb[0].mxu0
    %v1010 = vadd.f32 %v308, %v1009
    %1011 = vdwg.mxu0
    %1012 = vmatprep.subr.mxu0 %v252
    %1013 = vmatpush1.msra.mxu0 %v251
    %1014 = vmatprep.subr.mxu0 %v254
    %1015 = vmatpush1.msra.mxu0 %v253
    %1016 = vmatprep.subr.mxu0 %v256
    %1017 = vmatpush1.msra.mxu0 %v255
    %1018 = vmatprep.subr.mxu0 %v258
    %1019 = vmatpush1.msra.mxu0 %v257
    %1020 = vmatprep.subr.mxu0 %v260
    %1021 = vmatpush1.msra.mxu0 %v259
    %1022 = vmatprep.subr.mxu0 %v262
    %1023 = vmatpush1.msra.mxu0 %v261
    %1024 = vmatprep.subr.mxu0 %v264
    %1025 = vmatpush1.msra.mxu0 %v263
    %1026 = vmatprep.subr.mxu0 %v266
    %1027 = vmatpush1.msra.mxu0 %v265
    %1028 = vmatprep.subr.mxu0 0.0
    %1029 = vmatpush1.msra.mxu0 0.0
    %1030 = vmatprep.subr.mxu0 0.0
    %1031 = vmatpush1.msra.mxu0 0.0
    %1032 = vmatprep.subr.mxu0 0.0
    %1033 = vmatpush1.msra.mxu0 0.0
    %1034 = vmatprep.subr.mxu0 0.0
    %1035 = vmatpush1.msra.mxu0 0.0
    %1036 = vmatprep.subr.mxu0 0.0
    %1037 = vmatpush1.msra.mxu0 0.0
    %1038 = vmatprep.subr.mxu0 0.0
    %1039 = vmatpush1.msra.mxu0 0.0
    %1040 = vmatprep.subr.mxu0 0.0
    %1041 = vmatpush1.msra.mxu0 0.0
    %1042 = vmatprep.subr.mxu0 0.0
    %1043 = vmatpush1.msra.mxu0 0.0
    %1044 = vmatprep.subr.mxu0 0.0
    %1045 = vmatpush1.msra.mxu0 0.0
    %1046 = vmatprep.subr.mxu0 0.0
    %1047 = vmatpush1.msra.mxu0 0.0
    %1048 = vmatprep.subr.mxu0 0.0
    %1049 = vmatpush1.msra.mxu0 0.0
    %1050 = vmatprep.subr.mxu0 0.0
    %1051 = vmatpush1.msra.mxu0 0.0
    %1052 = vmatprep.subr.mxu0 0.0
    %1053 = vmatpush1.msra.mxu0 0.0
    %1054 = vmatprep.subr.mxu0 0.0
    %1055 = vmatpush1.msra.mxu0 0.0
    %1056 = vmatprep.subr.mxu0 0.0
    %1057 = vmatpush1.msra.mxu0 0.0
    %1058 = vmatprep.subr.mxu0 0.0
    %1059 = vmatpush1.msra.mxu0 0.0
    %1060 = vmatprep.subr.mxu0 0.0
    %1061 = vmatpush1.msra.mxu0 0.0
    %1062 = vmatprep.subr.mxu0 0.0
    %1063 = vmatpush1.msra.mxu0 0.0
    %1064 = vmatprep.subr.mxu0 0.0
    %1065 = vmatpush1.msra.mxu0 0.0
    %1066 = vmatprep.subr.mxu0 0.0
    %1067 = vmatpush1.msra.mxu0 0.0
    %1068 = vmatprep.subr.mxu0 0.0
    %1069 = vmatpush1.msra.mxu0 0.0
    %1070 = vmatprep.subr.mxu0 0.0
    %1071 = vmatpush1.msra.mxu0 0.0
    %1072 = vmatprep.subr.mxu0 0.0
    %1073 = vmatpush1.msra.mxu0 0.0
    %1074 = vmatprep.subr.mxu0 0.0
    %1075 = vmatpush1.msra.mxu0 0.0
    %1076 = vmatprep.mubr.f32.mxu0 0.0
    %1077 = vmatmul.mubr.f32.gmra.mrb[0].mxu0 %v939
    %v1078 = vpop.f32.mrb[0].mxu0
    %v1079 = vadd.f32 0.0, %v1078
    %v1080 = vpop.f32.mrb[0].mxu0
    %v1081 = vadd.f32 0.0, %v1080
    %1082 = vdwg.mxu0
    %v1083 = vadd.f32 %v173, %v1079
    %v1084 = vadd.f32 %v239, %v1081
    %v1085 = vmul.f32 %v1083, %v316
    %v1086 = vmul.f32 %v1084, %v317
    %v1087 = vtanh.pop %v1085
    %v1088 = vtanh.pop %v1086
    %v1089 = vmul.f32 %v1087, %v316
    %v1090 = vmul.f32 %v1088, %v317
    %v1091 = vadd.f32 %v1089, %v318
    %v1092 = vadd.f32 %v1090, %v319
    %v1093 = vmul.f32 %v1091, %v931
    %1095 = vrot.lane.b32.xlu0 %v1092, 64
    %v1096 = vpop.permute.xlu0 %1095
    %v1098 = vmul.f32 %v1091, %v1096
    %1100 = vrot.lane.b32.xlu0 %v1098, 64
    %v1101 = vpop.permute.xlu0 %1100
    %v1103 = vadd.f32 %v1093, %v1101
    %v1104 = vtanh.pop %v1103
    %1106 = vrot.lane.b32.xlu0 %v1104, 64
    %v1107 = vpop.permute.xlu0 %1106
    %v1109 = vmul.f32 %v1092, %v1107
    %v1111 = vsel %vm320, %v1109, 0
    %1113 = vmatprep.subr.mxu0 %v268
    %1114 = vmatpush1.msra.mxu0 %v267
    %1115 = vmatprep.subr.mxu0 %v270
    %1116 = vmatpush1.msra.mxu0 %v269
    %1117 = vmatprep.subr.mxu0 %v272
    %1118 = vmatpush1.msra.mxu0 %v271
    %1119 = vmatprep.subr.mxu0 %v274
    %1120 = vmatpush1.msra.mxu0 %v273
    %1121 = vmatprep.subr.mxu0 %v276
    %1122 = vmatpush1.msra.mxu0 %v275
    %1123 = vmatprep.subr.mxu0 %v278
    %1124 = vmatpush1.msra.mxu0 %v277
    %1125 = vmatprep.subr.mxu0 %v280
    %1126 = vmatpush1.msra.mxu0 %v279
    %1127 = vmatprep.subr.mxu0 %v282
    %1128 = vmatpush1.msra.mxu0 %v281
    %1129 = vmatprep.subr.mxu0 0.0
    %1130 = vmatpush1.msra.mxu0 0.0
    %1131 = vmatprep.subr.mxu0 0.0
    %1132 = vmatpush1.msra.mxu0 0.0
    %1133 = vmatprep.subr.mxu0 0.0
    %1134 = vmatpush1.msra.mxu0 0.0
    %1135 = vmatprep.subr.mxu0 0.0
    %1136 = vmatpush1.msra.mxu0 0.0
    %1137 = vmatprep.subr.mxu0 0.0
    %1138 = vmatpush1.msra.mxu0 0.0
    %1139 = vmatprep.subr.mxu0 0.0
    %1140 = vmatpush1.msra.mxu0 0.0
    %1141 = vmatprep.subr.mxu0 0.0
    %1142 = vmatpush1.msra.mxu0 0.0
    %1143 = vmatprep.subr.mxu0 0.0
    %1144 = vmatpush1.msra.mxu0 0.0
    %1145 = vmatprep.subr.mxu0 0.0
    %1146 = vmatpush1.msra.mxu0 0.0
    %1147 = vmatprep.subr.mxu0 0.0
    %1148 = vmatpush1.msra.mxu0 0.0
    %1149 = vmatprep.subr.mxu0 0.0
    %1150 = vmatpush1.msra.mxu0 0.0
    %1151 = vmatprep.subr.mxu0 0.0
    %1152 = vmatpush1.msra.mxu0 0.0
    %1153 = vmatprep.subr.mxu0 0.0
    %1154 = vmatpush1.msra.mxu0 0.0
    %1155 = vmatprep.subr.mxu0 0.0
    %1156 = vmatpush1.msra.mxu0 0.0
    %1157 = vmatprep.subr.mxu0 0.0
    %1158 = vmatpush1.msra.mxu0 0.0
    %1159 = vmatprep.subr.mxu0 0.0
    %1160 = vmatpush1.msra.mxu0 0.0
    %1161 = vmatprep.subr.mxu0 0.0
    %1162 = vmatpush1.msra.mxu0 0.0
    %1163 = vmatprep.subr.mxu0 0.0
    %1164 = vmatpush1.msra.mxu0 0.0
    %1165 = vmatprep.subr.mxu0 0.0
    %1166 = vmatpush1.msra.mxu0 0.0
    %1167 = vmatprep.subr.mxu0 0.0
    %1168 = vmatpush1.msra.mxu0 0.0
    %1169 = vmatprep.subr.mxu0 0.0
    %1170 = vmatpush1.msra.mxu0 0.0
    %1171 = vmatprep.subr.mxu0 0.0
    %1172 = vmatpush1.msra.mxu0 0.0
    %1173 = vmatprep.subr.mxu0 0.0
    %1174 = vmatpush1.msra.mxu0 0.0
    %1175 = vmatprep.subr.mxu0 0.0
    %1176 = vmatpush1.msra.mxu0 0.0
    %1177 = vmatprep.mubr.f32.mxu0 0.0
    %1178 = vmatmul.mubr.f32.gmra.mrb[0].mxu0 %v1111
    %v1179 = vpop.f32.mrb[0].mxu0
    %v1180 = vadd.f32 %v304, %v1179
    %v1181 = vpop.f32.mrb[0].mxu0
    %v1182 = vadd.f32 %v308, %v1181
    %1183 = vdwg.mxu0
    %1184 = vmatprep.subr.mxu0 %v252
    %1185 = vmatpush1.msra.mxu0 %v251
    %1186 = vmatprep.subr.mxu0 %v254
    %1187 = vmatpush1.msra.mxu0 %v253
    %1188 = vmatprep.subr.mxu0 %v256
    %1189 = vmatpush1.msra.mxu0 %v255
    %1190 = vmatprep.subr.mxu0 %v258
    %1191 = vmatpush1.msra.mxu0 %v257
    %1192 = vmatprep.subr.mxu0 %v260
    %1193 = vmatpush1.msra.mxu0 %v259
    %1194 = vmatprep.subr.mxu0 %v262
    %1195 = vmatpush1.msra.mxu0 %v261
    %1196 = vmatprep.subr.mxu0 %v264
    %1197 = vmatpush1.msra.mxu0 %v263
    %1198 = vmatprep.subr.mxu0 %v266
    %1199 = vmatpush1.msra.mxu0 %v265
    %1200 = vmatprep.subr.mxu0 0.0
    %1201 = vmatpush1.msra.mxu0 0.0
    %1202 = vmatprep.subr.mxu0 0.0
    %1203 = vmatpush1.msra.mxu0 0.0
    %1204 = vmatprep.subr.mxu0 0.0
    %1205 = vmatpush1.msra.mxu0 0.0
    %1206 = vmatprep.subr.mxu0 0.0
    %1207 = vmatpush1.msra.mxu0 0.0
    %1208 = vmatprep.subr.mxu0 0.0
    %1209 = vmatpush1.msra.mxu0 0.0
    %1210 = vmatprep.subr.mxu0 0.0
    %1211 = vmatpush1.msra.mxu0 0.0
    %1212 = vmatprep.subr.mxu0 0.0
    %1213 = vmatpush1.msra.mxu0 0.0
    %1214 = vmatprep.subr.mxu0 0.0
    %1215 = vmatpush1.msra.mxu0 0.0
    %1216 = vmatprep.subr.mxu0 0.0
    %1217 = vmatpush1.msra.mxu0 0.0
    %1218 = vmatprep.subr.mxu0 0.0
    %1219 = vmatpush1.msra.mxu0 0.0
    %1220 = vmatprep.subr.mxu0 0.0
    %1221 = vmatpush1.msra.mxu0 0.0
    %1222 = vmatprep.subr.mxu0 0.0
    %1223 = vmatpush1.msra.mxu0 0.0
    %1224 = vmatprep.subr.mxu0 0.0
    %1225 = vmatpush1.msra.mxu0 0.0
    %1226 = vmatprep.subr.mxu0 0.0
    %1227 = vmatpush1.msra.mxu0 0.0
    %1228 = vmatprep.subr.mxu0 0.0
    %1229 = vmatpush1.msra.mxu0 0.0
    %1230 = vmatprep.subr.mxu0 0.0
    %1231 = vmatpush1.msra.mxu0 0.0
    %1232 = vmatprep.subr.mxu0 0.0
    %1233 = vmatpush1.msra.mxu0 0.0
    %1234 = vmatprep.subr.mxu0 0.0
    %1235 = vmatpush1.msra.mxu0 0.0
    %1236 = vmatprep.subr.mxu0 0.0
    %1237 = vmatpush1.msra.mxu0 0.0
    %1238 = vmatprep.subr.mxu0 0.0
    %1239 = vmatpush1.msra.mxu0 0.0
    %1240 = vmatprep.subr.mxu0 0.0
    %1241 = vmatpush1.msra.mxu0 0.0
    %1242 = vmatprep.subr.mxu0 0.0
    %1243 = vmatpush1.msra.mxu0 0.0
    %1244 = vmatprep.subr.mxu0 0.0
    %1245 = vmatpush1.msra.mxu0 0.0
    %1246 = vmatprep.subr.mxu0 0.0
    %1247 = vmatpush1.msra.mxu0 0.0
    %1248 = vmatprep.mubr.f32.mxu0 0.0
    %1249 = vmatmul.mubr.f32.gmra.mrb[0].mxu0 %v1111
    %v1250 = vpop.f32.mrb[0].mxu0
    %v1251 = vadd.f32 0.0, %v1250
    %v1252 = vpop.f32.mrb[0].mxu0
    %v1253 = vadd.f32 0.0, %v1252
    %1254 = vdwg.mxu0
    %v1255 = vadd.f32 %v183, %v1251
    %v1256 = vadd.f32 %v249, %v1253
    %v1257 = vmul.f32 %v1255, %v316
    %v1258 = vmul.f32 %v1256, %v317
    %v1259 = vtanh.pop %v1257
    %v1260 = vtanh.pop %v1258
    %v1261 = vmul.f32 %v1259, %v316
    %v1262 = vmul.f32 %v1260, %v317
    %v1263 = vadd.f32 %v1261, %v318
    %v1264 = vadd.f32 %v1262, %v319
    %v1265 = vmul.f32 %v1263, %v1103
    %1267 = vrot.lane.b32.xlu0 %v1264, 64
    %v1268 = vpop.permute.xlu0 %1267
    %v1270 = vmul.f32 %v1263, %v1268
    %1272 = vrot.lane.b32.xlu0 %v1270, 64
    %v1273 = vpop.permute.xlu0 %1272
    %v1275 = vadd.f32 %v1265, %v1273
    %v1276 = vtanh.pop %v1275
    %1278 = vrot.lane.b32.xlu0 %v1276, 64
    %v1279 = vpop.permute.xlu0 %1278
    %v1281 = vmul.f32 %v1264, %v1279
    %v1283 = vsel %vm320, %v1281, 0
    %1285 = vmatprep.subr.mxu0 %v268
    %1286 = vmatpush1.msra.mxu0 %v267
    %1287 = vmatprep.subr.mxu0 %v270
    %1288 = vmatpush1.msra.mxu0 %v269
    %1289 = vmatprep.subr.mxu0 %v272
    %1290 = vmatpush1.msra.mxu0 %v271
    %1291 = vmatprep.subr.mxu0 %v274
    %1292 = vmatpush1.msra.mxu0 %v273
    %1293 = vmatprep.subr.mxu0 %v276
    %1294 = vmatpush1.msra.mxu0 %v275
    %1295 = vmatprep.subr.mxu0 %v278
    %1296 = vmatpush1.msra.mxu0 %v277
    %1297 = vmatprep.subr.mxu0 %v280
    %1298 = vmatpush1.msra.mxu0 %v279
    %1299 = vmatprep.subr.mxu0 %v282
    %1300 = vmatpush1.msra.mxu0 %v281
    %1301 = vmatprep.subr.mxu0 0.0
    %1302 = vmatpush1.msra.mxu0 0.0
    %1303 = vmatprep.subr.mxu0 0.0
    %1304 = vmatpush1.msra.mxu0 0.0
    %1305 = vmatprep.subr.mxu0 0.0
    %1306 = vmatpush1.msra.mxu0 0.0
    %1307 = vmatprep.subr.mxu0 0.0
    %1308 = vmatpush1.msra.mxu0 0.0
    %1309 = vmatprep.subr.mxu0 0.0
    %1310 = vmatpush1.msra.mxu0 0.0
    %1311 = vmatprep.subr.mxu0 0.0
    %1312 = vmatpush1.msra.mxu0 0.0
    %1313 = vmatprep.subr.mxu0 0.0
    %1314 = vmatpush1.msra.mxu0 0.0
    %1315 = vmatprep.subr.mxu0 0.0
    %1316 = vmatpush1.msra.mxu0 0.0
    %1317 = vmatprep.subr.mxu0 0.0
    %1318 = vmatpush1.msra.mxu0 0.0
    %1319 = vmatprep.subr.mxu0 0.0
    %1320 = vmatpush1.msra.mxu0 0.0
    %1321 = vmatprep.subr.mxu0 0.0
    %1322 = vmatpush1.msra.mxu0 0.0
    %1323 = vmatprep.subr.mxu0 0.0
    %1324 = vmatpush1.msra.mxu0 0.0
    %1325 = vmatprep.subr.mxu0 0.0
    %1326 = vmatpush1.msra.mxu0 0.0
    %1327 = vmatprep.subr.mxu0 0.0
    %1328 = vmatpush1.msra.mxu0 0.0
    %1329 = vmatprep.subr.mxu0 0.0
    %1330 = vmatpush1.msra.mxu0 0.0
    %1331 = vmatprep.subr.mxu0 0.0
    %1332 = vmatpush1.msra.mxu0 0.0
    %1333 = vmatprep.subr.mxu0 0.0
    %1334 = vmatpush1.msra.mxu0 0.0
    %1335 = vmatprep.subr.mxu0 0.0
    %1336 = vmatpush1.msra.mxu0 0.0
    %1337 = vmatprep.subr.mxu0 0.0
    %1338 = vmatpush1.msra.mxu0 0.0
    %1339 = vmatprep.subr.mxu0 0.0
    %1340 = vmatpush1.msra.mxu0 0.0
    %1341 = vmatprep.subr.mxu0 0.0
    %1342 = vmatpush1.msra.mxu0 0.0
    %1343 = vmatprep.subr.mxu0 0.0
    %1344 = vmatpush1.msra.mxu0 0.0
    %1345 = vmatprep.subr.mxu0 0.0
    %1346 = vmatpush1.msra.mxu0 0.0
    %1347 = vmatprep.subr.mxu0 0.0
    %1348 = vmatpush1.msra.mxu0 0.0
    %1349 = vmatprep.mubr.f32.mxu0 0.0
    %1350 = vmatmul.mubr.f32.gmra.mrb[0].mxu0 %v1283
    %v1351 = vpop.f32.mrb[0].mxu0
    %v1352 = vadd.f32 %v304, %v1351
    %v1353 = vpop.f32.mrb[0].mxu0
    %v1354 = vadd.f32 %v308, %v1353
    %1355 = vdwg.mxu0
    %1356 = vmatprep.subr.mxu0 %v252
    %1357 = vmatpush1.msra.mxu0 %v251
    %1358 = vmatprep.subr.mxu0 %v254
    %1359 = vmatpush1.msra.mxu0 %v253
    %1360 = vmatprep.subr.mxu0 %v256
    %1361 = vmatpush1.msra.mxu0 %v255
    %1362 = vmatprep.subr.mxu0 %v258
    %1363 = vmatpush1.msra.mxu0 %v257
    %1364 = vmatprep.subr.mxu0 %v260
    %1365 = vmatpush1.msra.mxu0 %v259
    %1366 = vmatprep.subr.mxu0 %v262
    %1367 = vmatpush1.msra.mxu0 %v261
    %1368 = vmatprep.subr.mxu0 %v264
    %1369 = vmatpush1.msra.mxu0 %v263
    %1370 = vmatprep.subr.mxu0 %v266
    %1371 = vmatpush1.msra.mxu0 %v265
    %1372 = vmatprep.subr.mxu0 0.0
    %1373 = vmatpush1.msra.mxu0 0.0
    %1374 = vmatprep.subr.mxu0 0.0
    %1375 = vmatpush1.msra.mxu0 0.0
    %1376 = vmatprep.subr.mxu0 0.0
    %1377 = vmatpush1.msra.mxu0 0.0
    %1378 = vmatprep.subr.mxu0 0.0
    %1379 = vmatpush1.msra.mxu0 0.0
    %1380 = vmatprep.subr.mxu0 0.0
    %1381 = vmatpush1.msra.mxu0 0.0
    %1382 = vmatprep.subr.mxu0 0.0
    %1383 = vmatpush1.msra.mxu0 0.0
    %1384 = vmatprep.subr.mxu0 0.0
    %1385 = vmatpush1.msra.mxu0 0.0
    %1386 = vmatprep.subr.mxu0 0.0
    %1387 = vmatpush1.msra.mxu0 0.0
    %1388 = vmatprep.subr.mxu0 0.0
    %1389 = vmatpush1.msra.mxu0 0.0
    %1390 = vmatprep.subr.mxu0 0.0
    %1391 = vmatpush1.msra.mxu0 0.0
    %1392 = vmatprep.subr.mxu0 0.0
    %1393 = vmatpush1.msra.mxu0 0.0
    %1394 = vmatprep.subr.mxu0 0.0
    %1395 = vmatpush1.msra.mxu0 0.0
    %1396 = vmatprep.subr.mxu0 0.0
    %1397 = vmatpush1.msra.mxu0 0.0
    %1398 = vmatprep.subr.mxu0 0.0
    %1399 = vmatpush1.msra.mxu0 0.0
    %1400 = vmatprep.subr.mxu0 0.0
    %1401 = vmatpush1.msra.mxu0 0.0
    %1402 = vmatprep.subr.mxu0 0.0
    %1403 = vmatpush1.msra.mxu0 0.0
    %1404 = vmatprep.subr.mxu0 0.0
    %1405 = vmatpush1.msra.mxu0 0.0
    %1406 = vmatprep.subr.mxu0 0.0
    %1407 = vmatpush1.msra.mxu0 0.0
    %1408 = vmatprep.subr.mxu0 0.0
    %1409 = vmatpush1.msra.mxu0 0.0
    %1410 = vmatprep.subr.mxu0 0.0
    %1411 = vmatpush1.msra.mxu0 0.0
    %1412 = vmatprep.subr.mxu0 0.0
    %1413 = vmatpush1.msra.mxu0 0.0
    %1414 = vmatprep.subr.mxu0 0.0
    %1415 = vmatpush1.msra.mxu0 0.0
    %1416 = vmatprep.subr.mxu0 0.0
    %1417 = vmatpush1.msra.mxu0 0.0
    %1418 = vmatprep.subr.mxu0 0.0
    %1419 = vmatpush1.msra.mxu0 0.0
    %1420 = vmatprep.mubr.f32.mxu0 0.0
    %1421 = vmatmul.mubr.f32.gmra.mrb[0].mxu0 %v1283
    %v1422 = vpop.f32.mrb[0].mxu0
    %v1423 = vadd.f32 0.0, %v1422
    %v1424 = vpop.f32.mrb[0].mxu0
    %v1425 = vadd.f32 0.0, %v1424
    %1426 = vdwg.mxu0
    %v1427 = vadd.f32 %v180, %v1423
    %v1428 = vadd.f32 %v246, %v1425
    %v1429 = vmul.f32 %v1427, %v316
    %v1430 = vmul.f32 %v1428, %v317
    %v1431 = vtanh.pop %v1429
    %v1432 = vtanh.pop %v1430
    %v1433 = vmul.f32 %v1431, %v316
    %v1434 = vmul.f32 %v1432, %v317
    %v1435 = vadd.f32 %v1433, %v318
    %v1436 = vadd.f32 %v1434, %v319
    %v1437 = vmul.f32 %v1435, %v1275
    %1439 = vrot.lane.b32.xlu0 %v1436, 64
    %v1440 = vpop.permute.xlu0 %1439
    %v1442 = vmul.f32 %v1435, %v1440
    %1444 = vrot.lane.b32.xlu0 %v1442, 64
    %v1445 = vpop.permute.xlu0 %1444
    %v1447 = vadd.f32 %v1437, %v1445
    %v1448 = vtanh.pop %v1447
    %1450 = vrot.lane.b32.xlu0 %v1448, 64
    %v1451 = vpop.permute.xlu0 %1450
    %v1453 = vmul.f32 %v1436, %v1451
    %v1455 = vsel %vm320, %v1453, 0
    %1457 = vmatprep.subr.mxu0 %v268
    %1458 = vmatpush1.msra.mxu0 %v267
    %1459 = vmatprep.subr.mxu0 %v270
    %1460 = vmatpush1.msra.mxu0 %v269
    %1461 = vmatprep.subr.mxu0 %v272
    %1462 = vmatpush1.msra.mxu0 %v271
    %1463 = vmatprep.subr.mxu0 %v274
    %1464 = vmatpush1.msra.mxu0 %v273
    %1465 = vmatprep.subr.mxu0 %v276
    %1466 = vmatpush1.msra.mxu0 %v275
    %1467 = vmatprep.subr.mxu0 %v278
    %1468 = vmatpush1.msra.mxu0 %v277
    %1469 = vmatprep.subr.mxu0 %v280
    %1470 = vmatpush1.msra.mxu0 %v279
    %1471 = vmatprep.subr.mxu0 %v282
    %1472 = vmatpush1.msra.mxu0 %v281
    %1473 = vmatprep.subr.mxu0 0.0
    %1474 = vmatpush1.msra.mxu0 0.0
    %1475 = vmatprep.subr.mxu0 0.0
    %1476 = vmatpush1.msra.mxu0 0.0
    %1477 = vmatprep.subr.mxu0 0.0
    %1478 = vmatpush1.msra.mxu0 0.0
    %1479 = vmatprep.subr.mxu0 0.0
    %1480 = vmatpush1.msra.mxu0 0.0
    %1481 = vmatprep.subr.mxu0 0.0
    %1482 = vmatpush1.msra.mxu0 0.0
    %1483 = vmatprep.subr.mxu0 0.0
    %1484 = vmatpush1.msra.mxu0 0.0
    %1485 = vmatprep.subr.mxu0 0.0
    %1486 = vmatpush1.msra.mxu0 0.0
    %1487 = vmatprep.subr.mxu0 0.0
    %1488 = vmatpush1.msra.mxu0 0.0
    %1489 = vmatprep.subr.mxu0 0.0
    %1490 = vmatpush1.msra.mxu0 0.0
    %1491 = vmatprep.subr.mxu0 0.0
    %1492 = vmatpush1.msra.mxu0 0.0
    %1493 = vmatprep.subr.mxu0 0.0
    %1494 = vmatpush1.msra.mxu0 0.0
    %1495 = vmatprep.subr.mxu0 0.0
    %1496 = vmatpush1.msra.mxu0 0.0
    %1497 = vmatprep.subr.mxu0 0.0
    %1498 = vmatpush1.msra.mxu0 0.0
    %1499 = vmatprep.subr.mxu0 0.0
    %1500 = vmatpush1.msra.mxu0 0.0
    %1501 = vmatprep.subr.mxu0 0.0
    %1502 = vmatpush1.msra.mxu0 0.0
    %1503 = vmatprep.subr.mxu0 0.0
    %1504 = vmatpush1.msra.mxu0 0.0
    %1505 = vmatprep.subr.mxu0 0.0
    %1506 = vmatpush1.msra.mxu0 0.0
    %1507 = vmatprep.subr.mxu0 0.0
    %1508 = vmatpush1.msra.mxu0 0.0
    %1509 = vmatprep.subr.mxu0 0.0
    %1510 = vmatpush1.msra.mxu0 0.0
    %1511 = vmatprep.subr.mxu0 0.0
    %1512 = vmatpush1.msra.mxu0 0.0
    %1513 = vmatprep.subr.mxu0 0.0
    %1514 = vmatpush1.msra.mxu0 0.0
    %1515 = vmatprep.subr.mxu0 0.0
    %1516 = vmatpush1.msra.mxu0 0.0
    %1517 = vmatprep.subr.mxu0 0.0
    %1518 = vmatpush1.msra.mxu0 0.0
    %1519 = vmatprep.subr.mxu0 0.0
    %1520 = vmatpush1.msra.mxu0 0.0
    %1521 = vmatprep.mubr.f32.mxu0 0.0
    %1522 = vmatmul.mubr.f32.gmra.mrb[0].mxu0 %v1455
    %v1523 = vpop.f32.mrb[0].mxu0
    %v1524 = vadd.f32 %v304, %v1523
    %v1525 = vpop.f32.mrb[0].mxu0
    %v1526 = vadd.f32 %v308, %v1525
    %1527 = vdwg.mxu0
    %1528 = vmatprep.subr.mxu0 %v252
    %1529 = vmatpush1.msra.mxu0 %v251
    %1530 = vmatprep.subr.mxu0 %v254
    %1531 = vmatpush1.msra.mxu0 %v253
    %1532 = vmatprep.subr.mxu0 %v256
    %1533 = vmatpush1.msra.mxu0 %v255
    %1534 = vmatprep.subr.mxu0 %v258
    %1535 = vmatpush1.msra.mxu0 %v257
    %1536 = vmatprep.subr.mxu0 %v260
    %1537 = vmatpush1.msra.mxu0 %v259
    %1538 = vmatprep.subr.mxu0 %v262
    %1539 = vmatpush1.msra.mxu0 %v261
    %1540 = vmatprep.subr.mxu0 %v264
    %1541 = vmatpush1.msra.mxu0 %v263
    %1542 = vmatprep.subr.mxu0 %v266
    %1543 = vmatpush1.msra.mxu0 %v265
    %1544 = vmatprep.subr.mxu0 0.0
    %1545 = vmatpush1.msra.mxu0 0.0
    %1546 = vmatprep.subr.mxu0 0.0
    %1547 = vmatpush1.msra.mxu0 0.0
    %1548 = vmatprep.subr.mxu0 0.0
    %1549 = vmatpush1.msra.mxu0 0.0
    %1550 = vmatprep.subr.mxu0 0.0
    %1551 = vmatpush1.msra.mxu0 0.0
    %1552 = vmatprep.subr.mxu0 0.0
    %1553 = vmatpush1.msra.mxu0 0.0
    %1554 = vmatprep.subr.mxu0 0.0
    %1555 = vmatpush1.msra.mxu0 0.0
    %1556 = vmatprep.subr.mxu0 0.0
    %1557 = vmatpush1.msra.mxu0 0.0
    %1558 = vmatprep.subr.mxu0 0.0
    %1559 = vmatpush1.msra.mxu0 0.0
    %1560 = vmatprep.subr.mxu0 0.0
    %1561 = vmatpush1.msra.mxu0 0.0
    %1562 = vmatprep.subr.mxu0 0.0
    %1563 = vmatpush1.msra.mxu0 0.0
    %1564 = vmatprep.subr.mxu0 0.0
    %1565 = vmatpush1.msra.mxu0 0.0
    %1566 = vmatprep.subr.mxu0 0.0
    %1567 = vmatpush1.msra.mxu0 0.0
    %1568 = vmatprep.subr.mxu0 0.0
    %1569 = vmatpush1.msra.mxu0 0.0
    %1570 = vmatprep.subr.mxu0 0.0
    %1571 = vmatpush1.msra.mxu0 0.0
    %1572 = vmatprep.subr.mxu0 0.0
    %1573 = vmatpush1.msra.mxu0 0.0
    %1574 = vmatprep.subr.mxu0 0.0
    %1575 = vmatpush1.msra.mxu0 0.0
    %1576 = vmatprep.subr.mxu0 0.0
    %1577 = vmatpush1.msra.mxu0 0.0
    %1578 = vmatprep.subr.mxu0 0.0
    %1579 = vmatpush1.msra.mxu0 0.0
    %1580 = vmatprep.subr.mxu0 0.0
    %1581 = vmatpush1.msra.mxu0 0.0
    %1582 = vmatprep.subr.mxu0 0.0
    %1583 = vmatpush1.msra.mxu0 0.0
    %1584 = vmatprep.subr.mxu0 0.0
    %1585 = vmatpush1.msra.mxu0 0.0
    %1586 = vmatprep.subr.mxu0 0.0
    %1587 = vmatpush1.msra.mxu0 0.0
    %1588 = vmatprep.subr.mxu0 0.0
    %1589 = vmatpush1.msra.mxu0 0.0
    %1590 = vmatprep.subr.mxu0 0.0
    %1591 = vmatpush1.msra.mxu0 0.0
    %1592 = vmatprep.mubr.f32.mxu0 0.0
    %1593 = vmatmul.mubr.f32.gmra.mrb[0].mxu0 %v1455
    %v1594 = vpop.f32.mrb[0].mxu0
    %v1595 = vadd.f32 0.0, %v1594
    %v1596 = vpop.f32.mrb[0].mxu0
    %v1597 = vadd.f32 0.0, %v1596
    %1598 = vdwg.mxu0
    %v1599 = vadd.f32 %v184, %v1595
    %v1600 = vadd.f32 %v250, %v1597
    %v1601 = vmul.f32 %v1599, %v316
    %v1602 = vmul.f32 %v1600, %v317
    %v1603 = vtanh.pop %v1601
    %v1604 = vtanh.pop %v1602
    %v1605 = vmul.f32 %v1603, %v316
    %v1606 = vmul.f32 %v1604, %v317
    %v1607 = vadd.f32 %v1605, %v318
    %v1608 = vadd.f32 %v1606, %v319
    %v1609 = vmul.f32 %v1607, %v1447
    %1611 = vrot.lane.b32.xlu0 %v1608, 64
    %v1612 = vpop.permute.xlu0 %1611
    %v1614 = vmul.f32 %v1607, %v1612
    %1616 = vrot.lane.b32.xlu0 %v1614, 64
    %v1617 = vpop.permute.xlu0 %1616
    %v1619 = vadd.f32 %v1609, %v1617
    %v1620 = vtanh.pop %v1619
    %1622 = vrot.lane.b32.xlu0 %v1620, 64
    %v1623 = vpop.permute.xlu0 %1622
    %v1625 = vmul.f32 %v1608, %v1623
    %v1627 = vsel %vm320, %v1625, 0
    %1629 = vmatprep.subr.mxu0 %v268
    %1630 = vmatpush1.msra.mxu0 %v267
    %1631 = vmatprep.subr.mxu0 %v270
    %1632 = vmatpush1.msra.mxu0 %v269
    %1633 = vmatprep.subr.mxu0 %v272
    %1634 = vmatpush1.msra.mxu0 %v271
    %1635 = vmatprep.subr.mxu0 %v274
    %1636 = vmatpush1.msra.mxu0 %v273
    %1637 = vmatprep.subr.mxu0 %v276
    %1638 = vmatpush1.msra.mxu0 %v275
    %1639 = vmatprep.subr.mxu0 %v278
    %1640 = vmatpush1.msra.mxu0 %v277
    %1641 = vmatprep.subr.mxu0 %v280
    %1642 = vmatpush1.msra.mxu0 %v279
    %1643 = vmatprep.subr.mxu0 %v282
    %1644 = vmatpush1.msra.mxu0 %v281
    %1645 = vmatprep.subr.mxu0 0.0
    %1646 = vmatpush1.msra.mxu0 0.0
    %1647 = vmatprep.subr.mxu0 0.0
    %1648 = vmatpush1.msra.mxu0 0.0
    %1649 = vmatprep.subr.mxu0 0.0
    %1650 = vmatpush1.msra.mxu0 0.0
    %1651 = vmatprep.subr.mxu0 0.0
    %1652 = vmatpush1.msra.mxu0 0.0
    %1653 = vmatprep.subr.mxu0 0.0
    %1654 = vmatpush1.msra.mxu0 0.0
    %1655 = vmatprep.subr.mxu0 0.0
    %1656 = vmatpush1.msra.mxu0 0.0
    %1657 = vmatprep.subr.mxu0 0.0
    %1658 = vmatpush1.msra.mxu0 0.0
    %1659 = vmatprep.subr.mxu0 0.0
    %1660 = vmatpush1.msra.mxu0 0.0
    %1661 = vmatprep.subr.mxu0 0.0
    %1662 = vmatpush1.msra.mxu0 0.0
    %1663 = vmatprep.subr.mxu0 0.0
    %1664 = vmatpush1.msra.mxu0 0.0
    %1665 = vmatprep.subr.mxu0 0.0
    %1666 = vmatpush1.msra.mxu0 0.0
    %1667 = vmatprep.subr.mxu0 0.0
    %1668 = vmatpush1.msra.mxu0 0.0
    %1669 = vmatprep.subr.mxu0 0.0
    %1670 = vmatpush1.msra.mxu0 0.0
    %1671 = vmatprep.subr.mxu0 0.0
    %1672 = vmatpush1.msra.mxu0 0.0
    %1673 = vmatprep.subr.mxu0 0.0
    %1674 = vmatpush1.msra.mxu0 0.0
    %1675 = vmatprep.subr.mxu0 0.0
    %1676 = vmatpush1.msra.mxu0 0.0
    %1677 = vmatprep.subr.mxu0 0.0
    %1678 = vmatpush1.msra.mxu0 0.0
    %1679 = vmatprep.subr.mxu0 0.0
    %1680 = vmatpush1.msra.mxu0 0.0
    %1681 = vmatprep.subr.mxu0 0.0
    %1682 = vmatpush1.msra.mxu0 0.0
    %1683 = vmatprep.subr.mxu0 0.0
    %1684 = vmatpush1.msra.mxu0 0.0
    %1685 = vmatprep.subr.mxu0 0.0
    %1686 = vmatpush1.msra.mxu0 0.0
    %1687 = vmatprep.subr.mxu0 0.0
    %1688 = vmatpush1.msra.mxu0 0.0
    %1689 = vmatprep.subr.mxu0 0.0
    %1690 = vmatpush1.msra.mxu0 0.0
    %1691 = vmatprep.subr.mxu0 0.0
    %1692 = vmatpush1.msra.mxu0 0.0
    %1693 = vmatprep.mubr.f32.mxu0 0.0
    %1694 = vmatmul.mubr.f32.gmra.mrb[0].mxu0 %v1627
    %v1695 = vpop.f32.mrb[0].mxu0
    %v1696 = vadd.f32 %v304, %v1695
    %v1697 = vpop.f32.mrb[0].mxu0
    %v1698 = vadd.f32 %v308, %v1697
    %1699 = vdwg.mxu0
    %1700 = vmatprep.subr.mxu0 %v284
    %1701 = vmatpush1.msra.mxu0 %v283
    %1702 = vmatprep.subr.mxu0 %v286
    %1703 = vmatpush1.msra.mxu0 %v285
    %1704 = vmatprep.subr.mxu0 %v288
    %1705 = vmatpush1.msra.mxu0 %v287
    %1706 = vmatprep.subr.mxu0 %v290
    %1707 = vmatpush1.msra.mxu0 %v289
    %1708 = vmatprep.subr.mxu0 %v292
    %1709 = vmatpush1.msra.mxu0 %v291
    %1710 = vmatprep.subr.mxu0 %v294
    %1711 = vmatpush1.msra.mxu0 %v293
    %1712 = vmatprep.subr.mxu0 %v296
    %1713 = vmatpush1.msra.mxu0 %v295
    %1714 = vmatprep.subr.mxu0 %v298
    %1715 = vmatpush1.msra.mxu0 %v297
    %1716 = vmatprep.subr.mxu0 0.0
    %1717 = vmatpush1.msra.mxu0 0.0
    %1718 = vmatprep.subr.mxu0 0.0
    %1719 = vmatpush1.msra.mxu0 0.0
    %1720 = vmatprep.subr.mxu0 0.0
    %1721 = vmatpush1.msra.mxu0 0.0
    %1722 = vmatprep.subr.mxu0 0.0
    %1723 = vmatpush1.msra.mxu0 0.0
    %1724 = vmatprep.subr.mxu0 0.0
    %1725 = vmatpush1.msra.mxu0 0.0
    %1726 = vmatprep.subr.mxu0 0.0
    %1727 = vmatpush1.msra.mxu0 0.0
    %1728 = vmatprep.subr.mxu0 0.0
    %1729 = vmatpush1.msra.mxu0 0.0
    %1730 = vmatprep.subr.mxu0 0.0
    %1731 = vmatpush1.msra.mxu0 0.0
    %1732 = vmatprep.subr.mxu0 0.0
    %1733 = vmatpush1.msra.mxu0 0.0
    %1734 = vmatprep.subr.mxu0 0.0
    %1735 = vmatpush1.msra.mxu0 0.0
    %1736 = vmatprep.subr.mxu0 0.0
    %1737 = vmatpush1.msra.mxu0 0.0
    %1738 = vmatprep.subr.mxu0 0.0
    %1739 = vmatpush1.msra.mxu0 0.0
    %1740 = vmatprep.subr.mxu0 0.0
    %1741 = vmatpush1.msra.mxu0 0.0
    %1742 = vmatprep.subr.mxu0 0.0
    %1743 = vmatpush1.msra.mxu0 0.0
    %1744 = vmatprep.subr.mxu0 0.0
    %1745 = vmatpush1.msra.mxu0 0.0
    %1746 = vmatprep.subr.mxu0 0.0
    %1747 = vmatpush1.msra.mxu0 0.0
    %1748 = vmatprep.subr.mxu0 0.0
    %1749 = vmatpush1.msra.mxu0 0.0
    %1750 = vmatprep.subr.mxu0 0.0
    %1751 = vmatpush1.msra.mxu0 0.0
    %1752 = vmatprep.subr.mxu0 0.0
    %1753 = vmatpush1.msra.mxu0 0.0
    %1754 = vmatprep.subr.mxu0 0.0
    %1755 = vmatpush1.msra.mxu0 0.0
    %1756 = vmatprep.subr.mxu0 0.0
    %1757 = vmatpush1.msra.mxu0 0.0
    %1758 = vmatprep.subr.mxu0 0.0
    %1759 = vmatpush1.msra.mxu0 0.0
    %1760 = vmatprep.subr.mxu0 0.0
    %1761 = vmatpush1.msra.mxu0 0.0
    %1762 = vmatprep.subr.mxu0 0.0
    %1763 = vmatpush1.msra.mxu0 0.0
    %1764 = vmatprep.mubr.f32.mxu0 0.0
    %1765 = vmatmul.mubr.f32.gmra.mrb[0].mxu0 %v322
    %v1766 = vpop.f32.mrb[0].mxu0
    %v1767 = vadd.f32 0.0, %v1766
    %v1768 = vpop.f32.mrb[0].mxu0
    %v1769 = vadd.f32 0.0, %v1768
    %1770 = vdwg.mxu0
    %v1771 = vadd.f32 %v492, %v1767
    %v1772 = vadd.f32 %v494, %v1769
    %v1773 = vmul.f32 %v1771, %v316
    %v1774 = vmul.f32 %v1772, %v317
    %v1775 = vtanh.pop %v1773
    %v1776 = vtanh.pop %v1774
    %v1777 = vmul.f32 %v1775, %v316
    %v1778 = vmul.f32 %v1776, %v317
    %v1779 = vadd.f32 %v1777, %v318
    %v1780 = vadd.f32 %v1778, %v319
    %v1781 = vmul.f32 %v1779, 0.0
    %1783 = vrot.lane.b32.xlu0 %v1780, 64
    %v1784 = vpop.permute.xlu0 %1783
    %v1786 = vmul.f32 %v1779, %v1784
    %1788 = vrot.lane.b32.xlu0 %v1786, 64
    %v1789 = vpop.permute.xlu0 %1788
    %v1791 = vadd.f32 %v1781, %v1789
    %v1792 = vtanh.pop %v1791
    %1794 = vrot.lane.b32.xlu0 %v1792, 64
    %v1795 = vpop.permute.xlu0 %1794
    %v1797 = vmul.f32 %v1780, %v1795
    %v1799 = vsel %vm320, %v1797, 0
    %1801 = vmatprep.subr.mxu0 %v284
    %1802 = vmatpush1.msra.mxu0 %v283
    %1803 = vmatprep.subr.mxu0 %v286
    %1804 = vmatpush1.msra.mxu0 %v285
    %1805 = vmatprep.subr.mxu0 %v288
    %1806 = vmatpush1.msra.mxu0 %v287
    %1807 = vmatprep.subr.mxu0 %v290
    %1808 = vmatpush1.msra.mxu0 %v289
    %1809 = vmatprep.subr.mxu0 %v292
    %1810 = vmatpush1.msra.mxu0 %v291
    %1811 = vmatprep.subr.mxu0 %v294
    %1812 = vmatpush1.msra.mxu0 %v293
    %1813 = vmatprep.subr.mxu0 %v296
    %1814 = vmatpush1.msra.mxu0 %v295
    %1815 = vmatprep.subr.mxu0 %v298
    %1816 = vmatpush1.msra.mxu0 %v297
    %1817 = vmatprep.subr.mxu0 0.0
    %1818 = vmatpush1.msra.mxu0 0.0
    %1819 = vmatprep.subr.mxu0 0.0
    %1820 = vmatpush1.msra.mxu0 0.0
    %1821 = vmatprep.subr.mxu0 0.0
    %1822 = vmatpush1.msra.mxu0 0.0
    %1823 = vmatprep.subr.mxu0 0.0
    %1824 = vmatpush1.msra.mxu0 0.0
    %1825 = vmatprep.subr.mxu0 0.0
    %1826 = vmatpush1.msra.mxu0 0.0
    %1827 = vmatprep.subr.mxu0 0.0
    %1828 = vmatpush1.msra.mxu0 0.0
    %1829 = vmatprep.subr.mxu0 0.0
    %1830 = vmatpush1.msra.mxu0 0.0
    %1831 = vmatprep.subr.mxu0 0.0
    %1832 = vmatpush1.msra.mxu0 0.0
    %1833 = vmatprep.subr.mxu0 0.0
    %1834 = vmatpush1.msra.mxu0 0.0
    %1835 = vmatprep.subr.mxu0 0.0
    %1836 = vmatpush1.msra.mxu0 0.0
    %1837 = vmatprep.subr.mxu0 0.0
    %1838 = vmatpush1.msra.mxu0 0.0
    %1839 = vmatprep.subr.mxu0 0.0
    %1840 = vmatpush1.msra.mxu0 0.0
    %1841 = vmatprep.subr.mxu0 0.0
    %1842 = vmatpush1.msra.mxu0 0.0
    %1843 = vmatprep.subr.mxu0 0.0
    %1844 = vmatpush1.msra.mxu0 0.0
    %1845 = vmatprep.subr.mxu0 0.0
    %1846 = vmatpush1.msra.mxu0 0.0
    %1847 = vmatprep.subr.mxu0 0.0
    %1848 = vmatpush1.msra.mxu0 0.0
    %1849 = vmatprep.subr.mxu0 0.0
    %1850 = vmatpush1.msra.mxu0 0.0
    %1851 = vmatprep.subr.mxu0 0.0
    %1852 = vmatpush1.msra.mxu0 0.0
    %1853 = vmatprep.subr.mxu0 0.0
    %1854 = vmatpush1.msra.mxu0 0.0
    %1855 = vmatprep.subr.mxu0 0.0
    %1856 = vmatpush1.msra.mxu0 0.0
    %1857 = vmatprep.subr.mxu0 0.0
    %1858 = vmatpush1.msra.mxu0 0.0
    %1859 = vmatprep.subr.mxu0 0.0
    %1860 = vmatpush1.msra.mxu0 0.0
    %1861 = vmatprep.subr.mxu0 0.0
    %1862 = vmatpush1.msra.mxu0 0.0
    %1863 = vmatprep.subr.mxu0 0.0
    %1864 = vmatpush1.msra.mxu0 0.0
    %1865 = vmatprep.mubr.f32.mxu0 0.0
    %1866 = vmatmul.mubr.f32.gmra.mrb[0].mxu0 %v1799
    %v1867 = vpop.f32.mrb[0].mxu0
    %v1868 = vadd.f32 0.0, %v1867
    %v1869 = vpop.f32.mrb[0].mxu0
    %v1870 = vadd.f32 0.0, %v1869
    %1871 = vdwg.mxu0
    %v1872 = vadd.f32 %v664, %v1868
    %v1873 = vadd.f32 %v666, %v1870
    %v1874 = vmul.f32 %v1872, %v316
    %v1875 = vmul.f32 %v1873, %v317
    %v1876 = vtanh.pop %v1874
    %v1877 = vtanh.pop %v1875
    %v1878 = vmul.f32 %v1876, %v316
    %v1879 = vmul.f32 %v1877, %v317
    %v1880 = vadd.f32 %v1878, %v318
    %v1881 = vadd.f32 %v1879, %v319
    %v1882 = vmul.f32 %v1880, %v1791
    %1884 = vrot.lane.b32.xlu0 %v1881, 64
    %v1885 = vpop.permute.xlu0 %1884
    %v1887 = vmul.f32 %v1880, %v1885
    %1889 = vrot.lane.b32.xlu0 %v1887, 64
    %v1890 = vpop.permute.xlu0 %1889
    %v1892 = vadd.f32 %v1882, %v1890
    %v1893 = vtanh.pop %v1892
    %1895 = vrot.lane.b32.xlu0 %v1893, 64
    %v1896 = vpop.permute.xlu0 %1895
    %v1898 = vmul.f32 %v1881, %v1896
    %v1900 = vsel %vm320, %v1898, 0
    %1902 = vmatprep.subr.mxu0 %v284
    %1903 = vmatpush1.msra.mxu0 %v283
    %1904 = vmatprep.subr.mxu0 %v286
    %1905 = vmatpush1.msra.mxu0 %v285
    %1906 = vmatprep.subr.mxu0 %v288
    %1907 = vmatpush1.msra.mxu0 %v287
    %1908 = vmatprep.subr.mxu0 %v290
    %1909 = vmatpush1.msra.mxu0 %v289
    %1910 = vmatprep.subr.mxu0 %v292
    %1911 = vmatpush1.msra.mxu0 %v291
    %1912 = vmatprep.subr.mxu0 %v294
    %1913 = vmatpush1.msra.mxu0 %v293
    %1914 = vmatprep.subr.mxu0 %v296
    %1915 = vmatpush1.msra.mxu0 %v295
    %1916 = vmatprep.subr.mxu0 %v298
    %1917 = vmatpush1.msra.mxu0 %v297
    %1918 = vmatprep.subr.mxu0 0.0
    %1919 = vmatpush1.msra.mxu0 0.0
    %1920 = vmatprep.subr.mxu0 0.0
    %1921 = vmatpush1.msra.mxu0 0.0
    %1922 = vmatprep.subr.mxu0 0.0
    %1923 = vmatpush1.msra.mxu0 0.0
    %1924 = vmatprep.subr.mxu0 0.0
    %1925 = vmatpush1.msra.mxu0 0.0
    %1926 = vmatprep.subr.mxu0 0.0
    %1927 = vmatpush1.msra.mxu0 0.0
    %1928 = vmatprep.subr.mxu0 0.0
    %1929 = vmatpush1.msra.mxu0 0.0
    %1930 = vmatprep.subr.mxu0 0.0
    %1931 = vmatpush1.msra.mxu0 0.0
    %1932 = vmatprep.subr.mxu0 0.0
    %1933 = vmatpush1.msra.mxu0 0.0
    %1934 = vmatprep.subr.mxu0 0.0
    %1935 = vmatpush1.msra.mxu0 0.0
    %1936 = vmatprep.subr.mxu0 0.0
    %1937 = vmatpush1.msra.mxu0 0.0
    %1938 = vmatprep.subr.mxu0 0.0
    %1939 = vmatpush1.msra.mxu0 0.0
    %1940 = vmatprep.subr.mxu0 0.0
    %1941 = vmatpush1.msra.mxu0 0.0
    %1942 = vmatprep.subr.mxu0 0.0
    %1943 = vmatpush1.msra.mxu0 0.0
    %1944 = vmatprep.subr.mxu0 0.0
    %1945 = vmatpush1.msra.mxu0 0.0
    %1946 = vmatprep.subr.mxu0 0.0
    %1947 = vmatpush1.msra.mxu0 0.0
    %1948 = vmatprep.subr.mxu0 0.0
    %1949 = vmatpush1.msra.mxu0 0.0
    %1950 = vmatprep.subr.mxu0 0.0
    %1951 = vmatpush1.msra.mxu0 0.0
    %1952 = vmatprep.subr.mxu0 0.0
    %1953 = vmatpush1.msra.mxu0 0.0
    %1954 = vmatprep.subr.mxu0 0.0
    %1955 = vmatpush1.msra.mxu0 0.0
    %1956 = vmatprep.subr.mxu0 0.0
    %1957 = vmatpush1.msra.mxu0 0.0
    %1958 = vmatprep.subr.mxu0 0.0
    %1959 = vmatpush1.msra.mxu0 0.0
    %1960 = vmatprep.subr.mxu0 0.0
    %1961 = vmatpush1.msra.mxu0 0.0
    %1962 = vmatprep.subr.mxu0 0.0
    %1963 = vmatpush1.msra.mxu0 0.0
    %1964 = vmatprep.subr.mxu0 0.0
    %1965 = vmatpush1.msra.mxu0 0.0
    %1966 = vmatprep.mubr.f32.mxu0 0.0
    %1967 = vmatmul.mubr.f32.gmra.mrb[0].mxu0 %v1900
    %v1968 = vpop.f32.mrb[0].mxu0
    %v1969 = vadd.f32 0.0, %v1968
    %v1970 = vpop.f32.mrb[0].mxu0
    %v1971 = vadd.f32 0.0, %v1970
    %1972 = vdwg.mxu0
    %v1973 = vadd.f32 %v836, %v1969
    %v1974 = vadd.f32 %v838, %v1971
    %v1975 = vmul.f32 %v1973, %v316
    %v1976 = vmul.f32 %v1974, %v317
    %v1977 = vtanh.pop %v1975
    %v1978 = vtanh.pop %v1976
    %v1979 = vmul.f32 %v1977, %v316
    %v1980 = vmul.f32 %v1978, %v317
    %v1981 = vadd.f32 %v1979, %v318
    %v1982 = vadd.f32 %v1980, %v319
    %v1983 = vmul.f32 %v1981, %v1892
    %1985 = vrot.lane.b32.xlu0 %v1982, 64
    %v1986 = vpop.permute.xlu0 %1985
    %v1988 = vmul.f32 %v1981, %v1986
    %1990 = vrot.lane.b32.xlu0 %v1988, 64
    %v1991 = vpop.permute.xlu0 %1990
    %v1993 = vadd.f32 %v1983, %v1991
    %v1994 = vtanh.pop %v1993
    %1996 = vrot.lane.b32.xlu0 %v1994, 64
    %v1997 = vpop.permute.xlu0 %1996
    %v1999 = vmul.f32 %v1982, %v1997
    %v2001 = vsel %vm320, %v1999, 0
    %2003 = vmatprep.subr.mxu0 %v284
    %2004 = vmatpush1.msra.mxu0 %v283
    %2005 = vmatprep.subr.mxu0 %v286
    %2006 = vmatpush1.msra.mxu0 %v285
    %2007 = vmatprep.subr.mxu0 %v288
    %2008 = vmatpush1.msra.mxu0 %v287
    %2009 = vmatprep.subr.mxu0 %v290
    %2010 = vmatpush1.msra.mxu0 %v289
    %2011 = vmatprep.subr.mxu0 %v292
    %2012 = vmatpush1.msra.mxu0 %v291
    %2013 = vmatprep.subr.mxu0 %v294
    %2014 = vmatpush1.msra.mxu0 %v293
    %2015 = vmatprep.subr.mxu0 %v296
    %2016 = vmatpush1.msra.mxu0 %v295
    %2017 = vmatprep.subr.mxu0 %v298
    %2018 = vmatpush1.msra.mxu0 %v297
    %2019 = vmatprep.subr.mxu0 0.0
    %2020 = vmatpush1.msra.mxu0 0.0
    %2021 = vmatprep.subr.mxu0 0.0
    %2022 = vmatpush1.msra.mxu0 0.0
    %2023 = vmatprep.subr.mxu0 0.0
    %2024 = vmatpush1.msra.mxu0 0.0
    %2025 = vmatprep.subr.mxu0 0.0
    %2026 = vmatpush1.msra.mxu0 0.0
    %2027 = vmatprep.subr.mxu0 0.0
    %2028 = vmatpush1.msra.mxu0 0.0
    %2029 = vmatprep.subr.mxu0 0.0
    %2030 = vmatpush1.msra.mxu0 0.0
    %2031 = vmatprep.subr.mxu0 0.0
    %2032 = vmatpush1.msra.mxu0 0.0
    %2033 = vmatprep.subr.mxu0 0.0
    %2034 = vmatpush1.msra.mxu0 0.0
    %2035 = vmatprep.subr.mxu0 0.0
    %2036 = vmatpush1.msra.mxu0 0.0
    %2037 = vmatprep.subr.mxu0 0.0
    %2038 = vmatpush1.msra.mxu0 0.0
    %2039 = vmatprep.subr.mxu0 0.0
    %2040 = vmatpush1.msra.mxu0 0.0
    %2041 = vmatprep.subr.mxu0 0.0
    %2042 = vmatpush1.msra.mxu0 0.0
    %2043 = vmatprep.subr.mxu0 0.0
    %2044 = vmatpush1.msra.mxu0 0.0
    %2045 = vmatprep.subr.mxu0 0.0
    %2046 = vmatpush1.msra.mxu0 0.0
    %2047 = vmatprep.subr.mxu0 0.0
    %2048 = vmatpush1.msra.mxu0 0.0
    %2049 = vmatprep.subr.mxu0 0.0
    %2050 = vmatpush1.msra.mxu0 0.0
    %2051 = vmatprep.subr.mxu0 0.0
    %2052 = vmatpush1.msra.mxu0 0.0
    %2053 = vmatprep.subr.mxu0 0.0
    %2054 = vmatpush1.msra.mxu0 0.0
    %2055 = vmatprep.subr.mxu0 0.0
    %2056 = vmatpush1.msra.mxu0 0.0
    %2057 = vmatprep.subr.mxu0 0.0
    %2058 = vmatpush1.msra.mxu0 0.0
    %2059 = vmatprep.subr.mxu0 0.0
    %2060 = vmatpush1.msra.mxu0 0.0
    %2061 = vmatprep.subr.mxu0 0.0
    %2062 = vmatpush1.msra.mxu0 0.0
    %2063 = vmatprep.subr.mxu0 0.0
    %2064 = vmatpush1.msra.mxu0 0.0
    %2065 = vmatprep.subr.mxu0 0.0
    %2066 = vmatpush1.msra.mxu0 0.0
    %2067 = vmatprep.mubr.f32.mxu0 0.0
    %2068 = vmatmul.mubr.f32.gmra.mrb[0].mxu0 %v2001
    %v2069 = vpop.f32.mrb[0].mxu0
    %v2070 = vadd.f32 0.0, %v2069
    %v2071 = vpop.f32.mrb[0].mxu0
    %v2072 = vadd.f32 0.0, %v2071
    %2073 = vdwg.mxu0
    %v2074 = vadd.f32 %v1008, %v2070
    %v2075 = vadd.f32 %v1010, %v2072
    %v2076 = vmul.f32 %v2074, %v316
    %v2077 = vmul.f32 %v2075, %v317
    %v2078 = vtanh.pop %v2076
    %v2079 = vtanh.pop %v2077
    %v2080 = vmul.f32 %v2078, %v316
    %v2081 = vmul.f32 %v2079, %v317
    %v2082 = vadd.f32 %v2080, %v318
    %v2083 = vadd.f32 %v2081, %v319
    %v2084 = vmul.f32 %v2082, %v1993
    %2086 = vrot.lane.b32.xlu0 %v2083, 64
    %v2087 = vpop.permute.xlu0 %2086
    %v2089 = vmul.f32 %v2082, %v2087
    %2091 = vrot.lane.b32.xlu0 %v2089, 64
    %v2092 = vpop.permute.xlu0 %2091
    %v2094 = vadd.f32 %v2084, %v2092
    %v2095 = vtanh.pop %v2094
    %2097 = vrot.lane.b32.xlu0 %v2095, 64
    %v2098 = vpop.permute.xlu0 %2097
    %v2100 = vmul.f32 %v2083, %v2098
    %v2102 = vsel %vm320, %v2100, 0
    %2104 = vmatprep.subr.mxu0 %v284
    %2105 = vmatpush1.msra.mxu0 %v283
    %2106 = vmatprep.subr.mxu0 %v286
    %2107 = vmatpush1.msra.mxu0 %v285
    %2108 = vmatprep.subr.mxu0 %v288
    %2109 = vmatpush1.msra.mxu0 %v287
    %2110 = vmatprep.subr.mxu0 %v290
    %2111 = vmatpush1.msra.mxu0 %v289
    %2112 = vmatprep.subr.mxu0 %v292
    %2113 = vmatpush1.msra.mxu0 %v291
    %2114 = vmatprep.subr.mxu0 %v294
    %2115 = vmatpush1.msra.mxu0 %v293
    %2116 = vmatprep.subr.mxu0 %v296
    %2117 = vmatpush1.msra.mxu0 %v295
    %2118 = vmatprep.subr.mxu0 %v298
    %2119 = vmatpush1.msra.mxu0 %v297
    %2120 = vmatprep.subr.mxu0 0.0
    %2121 = vmatpush1.msra.mxu0 0.0
    %2122 = vmatprep.subr.mxu0 0.0
    %2123 = vmatpush1.msra.mxu0 0.0
    %2124 = vmatprep.subr.mxu0 0.0
    %2125 = vmatpush1.msra.mxu0 0.0
    %2126 = vmatprep.subr.mxu0 0.0
    %2127 = vmatpush1.msra.mxu0 0.0
    %2128 = vmatprep.subr.mxu0 0.0
    %2129 = vmatpush1.msra.mxu0 0.0
    %2130 = vmatprep.subr.mxu0 0.0
    %2131 = vmatpush1.msra.mxu0 0.0
    %2132 = vmatprep.subr.mxu0 0.0
    %2133 = vmatpush1.msra.mxu0 0.0
    %2134 = vmatprep.subr.mxu0 0.0
    %2135 = vmatpush1.msra.mxu0 0.0
    %2136 = vmatprep.subr.mxu0 0.0
    %2137 = vmatpush1.msra.mxu0 0.0
    %2138 = vmatprep.subr.mxu0 0.0
    %2139 = vmatpush1.msra.mxu0 0.0
    %2140 = vmatprep.subr.mxu0 0.0
    %2141 = vmatpush1.msra.mxu0 0.0
    %2142 = vmatprep.subr.mxu0 0.0
    %2143 = vmatpush1.msra.mxu0 0.0
    %2144 = vmatprep.subr.mxu0 0.0
    %2145 = vmatpush1.msra.mxu0 0.0
    %2146 = vmatprep.subr.mxu0 0.0
    %2147 = vmatpush1.msra.mxu0 0.0
    %2148 = vmatprep.subr.mxu0 0.0
    %2149 = vmatpush1.msra.mxu0 0.0
    %2150 = vmatprep.subr.mxu0 0.0
    %2151 = vmatpush1.msra.mxu0 0.0
    %2152 = vmatprep.subr.mxu0 0.0
    %2153 = vmatpush1.msra.mxu0 0.0
    %2154 = vmatprep.subr.mxu0 0.0
    %2155 = vmatpush1.msra.mxu0 0.0
    %2156 = vmatprep.subr.mxu0 0.0
    %2157 = vmatpush1.msra.mxu0 0.0
    %2158 = vmatprep.subr.mxu0 0.0
    %2159 = vmatpush1.msra.mxu0 0.0
    %2160 = vmatprep.subr.mxu0 0.0
    %2161 = vmatpush1.msra.mxu0 0.0
    %2162 = vmatprep.subr.mxu0 0.0
    %2163 = vmatpush1.msra.mxu0 0.0
    %2164 = vmatprep.subr.mxu0 0.0
    %2165 = vmatpush1.msra.mxu0 0.0
    %2166 = vmatprep.subr.mxu0 0.0
    %2167 = vmatpush1.msra.mxu0 0.0
    %2168 = vmatprep.mubr.f32.mxu0 0.0
    %2169 = vmatmul.mubr.f32.gmra.mrb[0].mxu0 %v2102
    %v2170 = vpop.f32.mrb[0].mxu0
    %v2171 = vadd.f32 0.0, %v2170
    %v2172 = vpop.f32.mrb[0].mxu0
    %v2173 = vadd.f32 0.0, %v2172
    %2174 = vdwg.mxu0
    %v2175 = vadd.f32 %v1180, %v2171
    %v2176 = vadd.f32 %v1182, %v2173
    %v2177 = vmul.f32 %v2175, %v316
    %v2178 = vmul.f32 %v2176, %v317
    %v2179 = vtanh.pop %v2177
    %v2180 = vtanh.pop %v2178
    %v2181 = vmul.f32 %v2179, %v316
    %v2182 = vmul.f32 %v2180, %v317
    %v2183 = vadd.f32 %v2181, %v318
    %v2184 = vadd.f32 %v2182, %v319
    %v2185 = vmul.f32 %v2183, %v2094
    %2187 = vrot.lane.b32.xlu0 %v2184, 64
    %v2188 = vpop.permute.xlu0 %2187
    %v2190 = vmul.f32 %v2183, %v2188
    %2192 = vrot.lane.b32.xlu0 %v2190, 64
    %v2193 = vpop.permute.xlu0 %2192
    %v2195 = vadd.f32 %v2185, %v2193
    %v2196 = vtanh.pop %v2195
    %2198 = vrot.lane.b32.xlu0 %v2196, 64
    %v2199 = vpop.permute.xlu0 %2198
    %v2201 = vmul.f32 %v2184, %v2199
    %v2203 = vsel %vm320, %v2201, 0
    %2205 = vmatprep.subr.mxu0 %v284
    %2206 = vmatpush1.msra.mxu0 %v283
    %2207 = vmatprep.subr.mxu0 %v286
    %2208 = vmatpush1.msra.mxu0 %v285
    %2209 = vmatprep.subr.mxu0 %v288
    %2210 = vmatpush1.msra.mxu0 %v287
    %2211 = vmatprep.subr.mxu0 %v290
    %2212 = vmatpush1.msra.mxu0 %v289
    %2213 = vmatprep.subr.mxu0 %v292
    %2214 = vmatpush1.msra.mxu0 %v291
    %2215 = vmatprep.subr.mxu0 %v294
    %2216 = vmatpush1.msra.mxu0 %v293
    %2217 = vmatprep.subr.mxu0 %v296
    %2218 = vmatpush1.msra.mxu0 %v295
    %2219 = vmatprep.subr.mxu0 %v298
    %2220 = vmatpush1.msra.mxu0 %v297
    %2221 = vmatprep.subr.mxu0 0.0
    %2222 = vmatpush1.msra.mxu0 0.0
    %2223 = vmatprep.subr.mxu0 0.0
    %2224 = vmatpush1.msra.mxu0 0.0
    %2225 = vmatprep.subr.mxu0 0.0
    %2226 = vmatpush1.msra.mxu0 0.0
    %2227 = vmatprep.subr.mxu0 0.0
    %2228 = vmatpush1.msra.mxu0 0.0
    %2229 = vmatprep.subr.mxu0 0.0
    %2230 = vmatpush1.msra.mxu0 0.0
    %2231 = vmatprep.subr.mxu0 0.0
    %2232 = vmatpush1.msra.mxu0 0.0
    %2233 = vmatprep.subr.mxu0 0.0
    %2234 = vmatpush1.msra.mxu0 0.0
    %2235 = vmatprep.subr.mxu0 0.0
    %2236 = vmatpush1.msra.mxu0 0.0
    %2237 = vmatprep.subr.mxu0 0.0
    %2238 = vmatpush1.msra.mxu0 0.0
    %2239 = vmatprep.subr.mxu0 0.0
    %2240 = vmatpush1.msra.mxu0 0.0
    %2241 = vmatprep.subr.mxu0 0.0
    %2242 = vmatpush1.msra.mxu0 0.0
    %2243 = vmatprep.subr.mxu0 0.0
    %2244 = vmatpush1.msra.mxu0 0.0
    %2245 = vmatprep.subr.mxu0 0.0
    %2246 = vmatpush1.msra.mxu0 0.0
    %2247 = vmatprep.subr.mxu0 0.0
    %2248 = vmatpush1.msra.mxu0 0.0
    %2249 = vmatprep.subr.mxu0 0.0
    %2250 = vmatpush1.msra.mxu0 0.0
    %2251 = vmatprep.subr.mxu0 0.0
    %2252 = vmatpush1.msra.mxu0 0.0
    %2253 = vmatprep.subr.mxu0 0.0
    %2254 = vmatpush1.msra.mxu0 0.0
    %2255 = vmatprep.subr.mxu0 0.0
    %2256 = vmatpush1.msra.mxu0 0.0
    %2257 = vmatprep.subr.mxu0 0.0
    %2258 = vmatpush1.msra.mxu0 0.0
    %2259 = vmatprep.subr.mxu0 0.0
    %2260 = vmatpush1.msra.mxu0 0.0
    %2261 = vmatprep.subr.mxu0 0.0
    %2262 = vmatpush1.msra.mxu0 0.0
    %2263 = vmatprep.subr.mxu0 0.0
    %2264 = vmatpush1.msra.mxu0 0.0
    %2265 = vmatprep.subr.mxu0 0.0
    %2266 = vmatpush1.msra.mxu0 0.0
    %2267 = vmatprep.subr.mxu0 0.0
    %2268 = vmatpush1.msra.mxu0 0.0
    %2269 = vmatprep.mubr.f32.mxu0 0.0
    %2270 = vmatmul.mubr.f32.gmra.mrb[0].mxu0 %v2203
    %v2271 = vpop.f32.mrb[0].mxu0
    %v2272 = vadd.f32 0.0, %v2271
    %v2273 = vpop.f32.mrb[0].mxu0
    %v2274 = vadd.f32 0.0, %v2273
    %2275 = vdwg.mxu0
    %v2276 = vadd.f32 %v1352, %v2272
    %v2277 = vadd.f32 %v1354, %v2274
    %v2278 = vmul.f32 %v2276, %v316
    %v2279 = vmul.f32 %v2277, %v317
    %v2280 = vtanh.pop %v2278
    %v2281 = vtanh.pop %v2279
    %v2282 = vmul.f32 %v2280, %v316
    %v2283 = vmul.f32 %v2281, %v317
    %v2284 = vadd.f32 %v2282, %v318
    %v2285 = vadd.f32 %v2283, %v319
    %v2286 = vmul.f32 %v2284, %v2195
    %2288 = vrot.lane.b32.xlu0 %v2285, 64
    %v2289 = vpop.permute.xlu0 %2288
    %v2291 = vmul.f32 %v2284, %v2289
    %2293 = vrot.lane.b32.xlu0 %v2291, 64
    %v2294 = vpop.permute.xlu0 %2293
    %v2296 = vadd.f32 %v2286, %v2294
    %v2297 = vtanh.pop %v2296
    %2299 = vrot.lane.b32.xlu0 %v2297, 64
    %v2300 = vpop.permute.xlu0 %2299
    %v2302 = vmul.f32 %v2285, %v2300
    %v2304 = vsel %vm320, %v2302, 0
    %2306 = vmatprep.subr.mxu0 %v284
    %2307 = vmatpush1.msra.mxu0 %v283
    %2308 = vmatprep.subr.mxu0 %v286
    %2309 = vmatpush1.msra.mxu0 %v285
    %2310 = vmatprep.subr.mxu0 %v288
    %2311 = vmatpush1.msra.mxu0 %v287
    %2312 = vmatprep.subr.mxu0 %v290
    %2313 = vmatpush1.msra.mxu0 %v289
    %2314 = vmatprep.subr.mxu0 %v292
    %2315 = vmatpush1.msra.mxu0 %v291
    %2316 = vmatprep.subr.mxu0 %v294
    %2317 = vmatpush1.msra.mxu0 %v293
    %2318 = vmatprep.subr.mxu0 %v296
    %2319 = vmatpush1.msra.mxu0 %v295
    %2320 = vmatprep.subr.mxu0 %v298
    %2321 = vmatpush1.msra.mxu0 %v297
    %2322 = vmatprep.subr.mxu0 0.0
    %2323 = vmatpush1.msra.mxu0 0.0
    %2324 = vmatprep.subr.mxu0 0.0
    %2325 = vmatpush1.msra.mxu0 0.0
    %2326 = vmatprep.subr.mxu0 0.0
    %2327 = vmatpush1.msra.mxu0 0.0
    %2328 = vmatprep.subr.mxu0 0.0
    %2329 = vmatpush1.msra.mxu0 0.0
    %2330 = vmatprep.subr.mxu0 0.0
    %2331 = vmatpush1.msra.mxu0 0.0
    %2332 = vmatprep.subr.mxu0 0.0
    %2333 = vmatpush1.msra.mxu0 0.0
    %2334 = vmatprep.subr.mxu0 0.0
    %2335 = vmatpush1.msra.mxu0 0.0
    %2336 = vmatprep.subr.mxu0 0.0
    %2337 = vmatpush1.msra.mxu0 0.0
    %2338 = vmatprep.subr.mxu0 0.0
    %2339 = vmatpush1.msra.mxu0 0.0
    %2340 = vmatprep.subr.mxu0 0.0
    %2341 = vmatpush1.msra.mxu0 0.0
    %2342 = vmatprep.subr.mxu0 0.0
    %2343 = vmatpush1.msra.mxu0 0.0
    %2344 = vmatprep.subr.mxu0 0.0
    %2345 = vmatpush1.msra.mxu0 0.0
    %2346 = vmatprep.subr.mxu0 0.0
    %2347 = vmatpush1.msra.mxu0 0.0
    %2348 = vmatprep.subr.mxu0 0.0
    %2349 = vmatpush1.msra.mxu0 0.0
    %2350 = vmatprep.subr.mxu0 0.0
    %2351 = vmatpush1.msra.mxu0 0.0
    %2352 = vmatprep.subr.mxu0 0.0
    %2353 = vmatpush1.msra.mxu0 0.0
    %2354 = vmatprep.subr.mxu0 0.0
    %2355 = vmatpush1.msra.mxu0 0.0
    %2356 = vmatprep.subr.mxu0 0.0
    %2357 = vmatpush1.msra.mxu0 0.0
    %2358 = vmatprep.subr.mxu0 0.0
    %2359 = vmatpush1.msra.mxu0 0.0
    %2360 = vmatprep.subr.mxu0 0.0
    %2361 = vmatpush1.msra.mxu0 0.0
    %2362 = vmatprep.subr.mxu0 0.0
    %2363 = vmatpush1.msra.mxu0 0.0
    %2364 = vmatprep.subr.mxu0 0.0
    %2365 = vmatpush1.msra.mxu0 0.0
    %2366 = vmatprep.subr.mxu0 0.0
    %2367 = vmatpush1.msra.mxu0 0.0
    %2368 = vmatprep.subr.mxu0 0.0
    %2369 = vmatpush1.msra.mxu0 0.0
    %2370 = vmatprep.mubr.f32.mxu0 0.0
    %2371 = vmatmul.mubr.f32.gmra.mrb[0].mxu0 %v2304
    %v2372 = vpop.f32.mrb[0].mxu0
    %v2373 = vadd.f32 0.0, %v2372
    %v2374 = vpop.f32.mrb[0].mxu0
    %v2375 = vadd.f32 0.0, %v2374
    %2376 = vdwg.mxu0
    %v2377 = vadd.f32 %v1524, %v2373
    %v2378 = vadd.f32 %v1526, %v2375
    %v2379 = vmul.f32 %v2377, %v316
    %v2380 = vmul.f32 %v2378, %v317
    %v2381 = vtanh.pop %v2379
    %v2382 = vtanh.pop %v2380
    %v2383 = vmul.f32 %v2381, %v316
    %v2384 = vmul.f32 %v2382, %v317
    %v2385 = vadd.f32 %v2383, %v318
    %v2386 = vadd.f32 %v2384, %v319
    %v2387 = vmul.f32 %v2385, %v2296
    %2389 = vrot.lane.b32.xlu0 %v2386, 64
    %v2390 = vpop.permute.xlu0 %2389
    %v2392 = vmul.f32 %v2385, %v2390
    %2394 = vrot.lane.b32.xlu0 %v2392, 64
    %v2395 = vpop.permute.xlu0 %2394
    %v2397 = vadd.f32 %v2387, %v2395
    %v2398 = vtanh.pop %v2397
    %2400 = vrot.lane.b32.xlu0 %v2398, 64
    %v2401 = vpop.permute.xlu0 %2400
    %v2403 = vmul.f32 %v2386, %v2401
    %v2405 = vsel %vm320, %v2403, 0
    %2407 = vmatprep.subr.mxu0 %v284
    %2408 = vmatpush1.msra.mxu0 %v283
    %2409 = vmatprep.subr.mxu0 %v286
    %2410 = vmatpush1.msra.mxu0 %v285
    %2411 = vmatprep.subr.mxu0 %v288
    %2412 = vmatpush1.msra.mxu0 %v287
    %2413 = vmatprep.subr.mxu0 %v290
    %2414 = vmatpush1.msra.mxu0 %v289
    %2415 = vmatprep.subr.mxu0 %v292
    %2416 = vmatpush1.msra.mxu0 %v291
    %2417 = vmatprep.subr.mxu0 %v294
    %2418 = vmatpush1.msra.mxu0 %v293
    %2419 = vmatprep.subr.mxu0 %v296
    %2420 = vmatpush1.msra.mxu0 %v295
    %2421 = vmatprep.subr.mxu0 %v298
    %2422 = vmatpush1.msra.mxu0 %v297
    %2423 = vmatprep.subr.mxu0 0.0
    %2424 = vmatpush1.msra.mxu0 0.0
    %2425 = vmatprep.subr.mxu0 0.0
    %2426 = vmatpush1.msra.mxu0 0.0
    %2427 = vmatprep.subr.mxu0 0.0
    %2428 = vmatpush1.msra.mxu0 0.0
    %2429 = vmatprep.subr.mxu0 0.0
    %2430 = vmatpush1.msra.mxu0 0.0
    %2431 = vmatprep.subr.mxu0 0.0
    %2432 = vmatpush1.msra.mxu0 0.0
    %2433 = vmatprep.subr.mxu0 0.0
    %2434 = vmatpush1.msra.mxu0 0.0
    %2435 = vmatprep.subr.mxu0 0.0
    %2436 = vmatpush1.msra.mxu0 0.0
    %2437 = vmatprep.subr.mxu0 0.0
    %2438 = vmatpush1.msra.mxu0 0.0
    %2439 = vmatprep.subr.mxu0 0.0
    %2440 = vmatpush1.msra.mxu0 0.0
    %2441 = vmatprep.subr.mxu0 0.0
    %2442 = vmatpush1.msra.mxu0 0.0
    %2443 = vmatprep.subr.mxu0 0.0
    %2444 = vmatpush1.msra.mxu0 0.0
    %2445 = vmatprep.subr.mxu0 0.0
    %2446 = vmatpush1.msra.mxu0 0.0
    %2447 = vmatprep.subr.mxu0 0.0
    %2448 = vmatpush1.msra.mxu0 0.0
    %2449 = vmatprep.subr.mxu0 0.0
    %2450 = vmatpush1.msra.mxu0 0.0
    %2451 = vmatprep.subr.mxu0 0.0
    %2452 = vmatpush1.msra.mxu0 0.0
    %2453 = vmatprep.subr.mxu0 0.0
    %2454 = vmatpush1.msra.mxu0 0.0
    %2455 = vmatprep.subr.mxu0 0.0
    %2456 = vmatpush1.msra.mxu0 0.0
    %2457 = vmatprep.subr.mxu0 0.0
    %2458 = vmatpush1.msra.mxu0 0.0
    %2459 = vmatprep.subr.mxu0 0.0
    %2460 = vmatpush1.msra.mxu0 0.0
    %2461 = vmatprep.subr.mxu0 0.0
    %2462 = vmatpush1.msra.mxu0 0.0
    %2463 = vmatprep.subr.mxu0 0.0
    %2464 = vmatpush1.msra.mxu0 0.0
    %2465 = vmatprep.subr.mxu0 0.0
    %2466 = vmatpush1.msra.mxu0 0.0
    %2467 = vmatprep.subr.mxu0 0.0
    %2468 = vmatpush1.msra.mxu0 0.0
    %2469 = vmatprep.subr.mxu0 0.0
    %2470 = vmatpush1.msra.mxu0 0.0
    %2471 = vmatprep.mubr.f32.mxu0 0.0
    %2472 = vmatmul.mubr.f32.gmra.mrb[0].mxu0 %v2405
    %v2473 = vpop.f32.mrb[0].mxu0
    %v2474 = vadd.f32 0.0, %v2473
    %v2475 = vpop.f32.mrb[0].mxu0
    %v2476 = vadd.f32 0.0, %v2475
    %2477 = vdwg.mxu0
    %v2478 = vadd.f32 %v1696, %v2474
    %v2479 = vadd.f32 %v1698, %v2476
    %v2480 = vmul.f32 %v2478, %v316
    %v2481 = vmul.f32 %v2479, %v317
    %v2482 = vtanh.pop %v2480
    %v2483 = vtanh.pop %v2481
    %v2484 = vmul.f32 %v2482, %v316
    %v2485 = vmul.f32 %v2483, %v317
    %v2486 = vadd.f32 %v2484, %v318
    %v2487 = vadd.f32 %v2485, %v319
    %v2488 = vmul.f32 %v2486, %v2397
    %2490 = vrot.lane.b32.xlu0 %v2487, 64
    %v2491 = vpop.permute.xlu0 %2490
    %v2493 = vmul.f32 %v2486, %v2491
    %2495 = vrot.lane.b32.xlu0 %v2493, 64
    %v2496 = vpop.permute.xlu0 %2495
    %v2498 = vadd.f32 %v2488, %v2496
    %v2499 = vtanh.pop %v2498
    %2501 = vrot.lane.b32.xlu0 %v2499, 64
    %v2502 = vpop.permute.xlu0 %2501
    %v2504 = vmul.f32 %v2487, %v2502
    %v2505 = vld [vmem:[%s7] sm:$0x1]
    %v2507 = vlaneseq
    %v2508 = vshrl.u32 %v2507, 7
    %v2509 = vsub.s32 0, %v2508
    %v2510 = vrot.slane %v2505, %v2509
    %v2512 = vmul.f32 %v2504, %v2510
    %vm2513 = vcmask 517120
    %v2514 = vsel %vm2513, %v2512, 0.0
    %2515 = vadd.xlane.f32.xlu0 %v2514
    %v2516 = vpop.xlane.xlu0 %2515
    %v2517 = vld [vmem:[#allocation2] sm:$0x1]
    %v2519 = vlaneseq
    %v2520 = vshrl.u32 %v2519, 7
    %v2521 = vsub.s32 0, %v2520
    %v2522 = vrot.slane %v2517, %v2521
    %v2524 = vadd.f32 %v2516, %v2522
    %vm2525 = vcmask 1024
    %2526 = vst.msk [vmem:[%s9] sm:$0x3] %vm2525, %v2524
    // Predicated region
    $region50: #{tpu_custom_call.1} parent=1 // pred_check
      _
    $region51: #{tpu_custom_call.1} parent=1 // pred_check_branch
      %2528 = sbr.rel (0) target = $region53
    $region52: #{tpu_custom_call.1} parent=1 // pred_region
      _
    $region53: #{tpu_custom_call.1} parent=1 // pred_fallthru
      _
    // Predicated region
    $region54: #{tpu_custom_call.1} parent=1 // pred_check
      _
    $region55: #{tpu_custom_call.1} parent=1 // pred_check_branch
      %2530 = sbr.rel (0) target = $region57
    $region56: #{tpu_custom_call.1} parent=1 // pred_region
      _
    $region57: #{tpu_custom_call.1} parent=1 // pred_fallthru
      _
    %2531 = vsyncpa [#allocation4], 1
    %2532 = vsyncpa [#allocation6], 1

</llo_original>
